<compile_context>
chip_gen: v5e
topology: v5e:2x2
jax: 0.10.0
libtpu: 0.0.40
codegen_flags: <defaults>
</compile_context>

<pallas_src>
import numpy as np

import jax
import jax.numpy as jnp
from jax.experimental import pallas as pl
from jax.experimental.pallas import tpu as pltpu


# ------------------------------ fused kernel -------------------------------

def _make_kernel(CS, CE, CO, L, T, MH, KPAD):
    """Kernel closure over the (static) architecture dimensions."""
    f32 = jnp.float32
    bf16 = jnp.bfloat16

    def kernel(xcols_ref,   # [KPAD, T*MH] bf16  stem im2col on the 9 tap grids
               wslab_ref,   # [CS+CE+2*CO, KPAD] f32  packed BN-folded weights
               shifts_ref,  # [max(C), 8]        f32  packed per-channel shifts
               wdwm_ref,    # [CE, T*MH]         f32  depthwise w * tapmask * BNscale
               whd_ref,     # [CO, L, MH]        f32  head weight (NCHW-flatten order)
               bsel_ref,    # [B, MH]            f32  per-image lane selector
               bhd_ref,     # [1, L]             f32  head bias
               out_ref):    # [B, L]             f32  logits
        # ---- unpack the packed parameter slabs (static slices) --------------
        w = wslab_ref[...]
        r1, r2, r3 = CS, CS + CE, CS + CE + CO
        wst = w[0:CS, 0:KPAD].astype(bf16)           # [CS, 9*Cin(+pad)]
        wex = w[r1:r1 + CE, 0:CS].astype(bf16)       # [CE, CS]
        wrd = w[r2:r2 + CO, 0:CE].astype(bf16)       # [CO, CE]
        wrs = w[r3:r3 + CO, 0:CS].astype(bf16)       # [CO, CS]

        shv = shifts_ref[...]
        sst = shv[0:CS, 0:1]
        sex = shv[0:CE, 1:2]
        sdw = shv[0:CE, 2:3]
        srd = shv[0:CO, 3:4]
        srs = shv[0:CO, 4:5]

        # ---- stem 3x3 conv evaluated on all 9 stride-2 tap grids: ONE MXU dot
        stem = jnp.maximum(
            jnp.dot(wst, xcols_ref[...], preferred_element_type=f32) + sst,
            0.0)                                     # [CS, T*MH]

        # residual input = center-tap grid (the stride-2 subsample of the stem
        # output); sliced EARLY so stem's f32 live range ends at the next cast.
        ctr = (T // 2) * MH
        st_c = stem[:, ctr:ctr + MH].astype(bf16)    # [CS, MH]
        stem = stem.astype(bf16)

        # ---- expand 1x1 conv + BN + ReLU (MXU) -------------------------------
        ex = jnp.maximum(
            jnp.dot(wex, stem, preferred_element_type=f32) + sex,
            0.0)                                     # [CE, T*MH]

        # ---- depthwise 3x3 stride-2 conv + BN + ReLU (VPU) -------------------
        # wdwm already carries the per-tap weight replicated across lanes, the
        # zero-padding tap mask, and the BN scale -> one full-width multiply
        # plus a lane-aligned tap-group reduction; no in-kernel broadcasts.
        prod = ex * wdwm_ref[...]                    # [CE, T*MH]
        acc = prod[:, 0:MH]
        for t in range(1, T):
            acc = acc + prod[:, t * MH:(t + 1) * MH]
        dwo = jnp.maximum(acc + sdw, 0.0).astype(bf16)   # [CE, MH]

        # ---- reduce 1x1 conv (+bias), then Pattern ReLU (MXU) ----------------
        pat = jnp.maximum(
            jnp.dot(wrd, dwo, preferred_element_type=f32) + srd, 0.0)

        # ---- residual 1x1 stride-2 conv + BN + ReLU (MXU) --------------------
        res = jnp.maximum(
            jnp.dot(wrs, st_c, preferred_element_type=f32) + srs, 0.0)

        blk = pat + res                              # [CO, MH]

        # ---- head: Linear over the NCHW-flattened block output ---------------
        # whd[c, l, m] = W[c*Ho*Wo + (m % Ho*Wo), l]
        q = blk[0:1, :] * whd_ref[0]                 # [L, MH]
        for c in range(1, CO):
            q = q + blk[c:c + 1, :] * whd_ref[c]
        logits = jax.lax.dot_general(                # per-image lane reduction
            bsel_ref[...], q, (((1,), (1,)), ((), ())),
            preferred_element_type=f32)              # [B, L]
        out_ref[...] = logits + bhd_ref[...]

    return kernel


def _full_spec(arr):
    nd = arr.ndim
    return pl.BlockSpec(arr.shape, lambda i, _nd=nd: (0,) * _nd)


# ------------------------------- JAX wrapper --------------------------------

def fold_bn(gamma, beta, mean, var, conv_bias=None, eps=1e-5):
    # eval-mode BatchNorm folded into a per-channel affine; conv bias folded in.
    scale = gamma / jnp.sqrt(var + eps)
    shift = beta - mean * scale
    if conv_bias is not None:
        shift = shift + conv_bias * scale
    return scale, shift


def searchspace_forward(x_nchw, params):
    B, Cin, H, W = x_nchw.shape
    Ho, Wo = H // 2, W // 2
    MH = B * Ho * Wo                  # half-res positions on the lane axis (128)
    T = 9                             # depthwise taps
    NBIG = T * MH                     # 9 tap grids packed on lanes
    KST = 9 * Cin                     # stem im2col contraction size
    KPAD = ((KST + 7) // 8) * 8       # pad to a sublane multiple

    # ---- trace-time constants (numpy) ----------------------------------------
    # depthwise-tap validity mask: tap position (2ho+dh-1, 2wo+dw-1) in-bounds
    dhs, hos = np.arange(3), np.arange(Ho)
    dws, wos = np.arange(3), np.arange(Wo)
    okh = ((2 * hos[None, :] + dhs[:, None] - 1) >= 0) & \
          ((2 * hos[None, :] + dhs[:, None] - 1) < H)
    okw = ((2 * wos[None, :] + dws[:, None] - 1) >= 0) & \
          ((2 * wos[None, :] + dws[:, None] - 1) < W)
    m5 = okh[:, None, None, :, None] & okw[None, :, None, None, :]
    tapmask = np.broadcast_to(m5, (3, 3, B, Ho, Wo)).reshape(T, MH).astype(np.float32)
    # per-image lane selector for the head reduction
    bsel = jnp.asarray(np.repeat(np.eye(B, dtype=np.float32), Ho * Wo, axis=1))

    # ---- stem im2col gathered directly on the 9 stride-2 tap grids (bf16) -----
    # xcols[(sh*3+sw)*Cin + cj, t*MH + m] = x[b, cj, 2ho+dh+sh-2, 2wo+dw+sw-2],
    # with t = dh*3+dw, m = b*Ho*Wo + ho*Wo + wo (25 unique strided slabs).
    # TODO(synk): this im2col prologue runs as XLA ops every call; for larger
    # shapes, move the 9-tap gather in-kernel via strided loads of padded x.
    xp = jnp.pad(x_nchw, ((0, 0), (0, 0), (2, 2), (2, 2)))
    slabs = {}
    for a in range(5):
        for b in range(5):
            s = xp[:, :, a:a + H:2, b:b + W:2]                    # [B,Cin,Ho,Wo]
            slabs[(a, b)] = jnp.transpose(s, (1, 0, 2, 3)).reshape(Cin, MH)
    xcols = jnp.concatenate(
        [jnp.concatenate([slabs[(dh + sh, dw + sw)]
                          for sh in range(3) for sw in range(3)], axis=0)
         for dh in range(3) for dw in range(3)], axis=1)          # [KST, NBIG]
    xcols = jnp.pad(xcols, ((0, KPAD - KST), (0, 0))).astype(jnp.bfloat16)

    # ---- fold BN into weights / shifts ----------------------------------------
    p = params["stem"]                          # w: [3,3,Cin,CS] (HWIO)
    sc, sh = fold_bn(p["bn_gamma"], p["bn_beta"], p["bn_mean"], p["bn_var"], p["bias"])
    CS = p["w"].shape[-1]
    wst = jnp.transpose(p["w"], (3, 0, 1, 2)).reshape(CS, KST) * sc[:, None]
    wst = jnp.pad(wst, ((0, 0), (0, KPAD - KST)))
    sst = sh

    p = params["expand"]                        # w: [CS, CE]
    sc, sh = fold_bn(p["bn_gamma"], p["bn_beta"], p["bn_mean"], p["bn_var"], p["bias"])
    wex = p["w"].T * sc[:, None]
    sex = sh
    CE = wex.shape[0]

    p = params["dw"]                            # w: [9, CE], taps ordered dh*3+dw
    sc, sh = fold_bn(p["bn_gamma"], p["bn_beta"], p["bn_mean"], p["bn_var"], p["bias"])
    wdwf = p["w"].T * sc[:, None]               # [CE, 9]
    sdw = sh
    # pre-replicate per-tap weights over the 128 lanes of each tap grid and fold
    # in the zero-padding mask -> no lane broadcasts inside the kernel.
    wdwm = (wdwf[:, :, None] * jnp.asarray(tapmask)[None, :, :]).reshape(CE, NBIG)

    p = params["reduce"]                        # w: [CE, CO], bias only (no BN)
    wrd = p["w"].T
    srd = p["bias"]
    CO = wrd.shape[0]

    p = params["residual"]                      # w: [CS, CO]
    sc, sh = fold_bn(p["bn_gamma"], p["bn_beta"], p["bn_mean"], p["bn_var"], p["bias"])
    wrs = p["w"].T * sc[:, None]
    srs = sh

    p = params["head"]                          # w: [CO*Ho*Wo, L], NCHW-flatten rows
    L = p["w"].shape[1]
    whd = jnp.tile(jnp.transpose(p["w"].reshape(CO, Ho * Wo, L), (0, 2, 1)), (1, 1, B))
    bhd = p["bias"][None, :]

    # ---- pack the tiny parameter tensors into two slabs (fewer DMAs) ----------
    RW = CS + CE + 2 * CO
    CW = max(KPAD, CS, CE)
    wslab = jnp.zeros((RW, CW), jnp.float32)
    wslab = wslab.at[0:CS, 0:KPAD].set(wst)
    wslab = wslab.at[CS:CS + CE, 0:CS].set(wex)
    wslab = wslab.at[CS + CE:CS + CE + CO, 0:CE].set(wrd)
    wslab = wslab.at[CS + CE + CO:RW, 0:CS].set(wrs)

    CMAX = max(CS, CE, CO)
    shifts = jnp.zeros((CMAX, 8), jnp.float32)
    shifts = shifts.at[0:CS, 0].set(sst)
    shifts = shifts.at[0:CE, 1].set(sex)
    shifts = shifts.at[0:CE, 2].set(sdw)
    shifts = shifts.at[0:CO, 3].set(srd)
    shifts = shifts.at[0:CO, 4].set(srs)

    kernel = _make_kernel(CS, CE, CO, L, T, MH, KPAD)
    args = (xcols, wslab, shifts, wdwm, whd, bsel, bhd)

    return pl.pallas_call(
        kernel,
        out_shape=jax.ShapeDtypeStruct((B, L), jnp.float32),
        grid=(1,),
        in_specs=[_full_spec(a) for a in args],
        out_specs=pl.BlockSpec((B, L), lambda i: (0, 0)),
        compiler_params=pltpu.CompilerParams(dimension_semantics=("arbitrary",)),
    )(*args)


# ---------------------------- pure-JAX reference ----------------------------

def reference_forward(x, params, eps=1e-5):
    def bn_apply(y, p):
        sc = p["bn_gamma"] / jnp.sqrt(p["bn_var"] + eps)
        sh = p["bn_beta"] - p["bn_mean"] * sc
        return y * sc[None, :, None, None] + sh[None, :, None, None]

    def conv(y, w_hwio, b, stride, pad, groups=1):
        out = jax.lax.conv_general_dilated(
            y, w_hwio, (stride, stride), [(pad, pad), (pad, pad)],
            dimension_numbers=("NCHW", "HWIO", "NCHW"),
            feature_group_count=groups)
        return out + b[None, :, None, None]

    p = params["stem"]
    stem = jax.nn.relu(bn_apply(conv(x, p["w"], p["bias"], 1, 1), p))

    p = params["expand"]
    ex = jax.nn.relu(bn_apply(conv(stem, p["w"][None, None], p["bias"], 1, 0), p))

    p = params["dw"]
    ce = ex.shape[1]
    dw = jax.nn.relu(bn_apply(
        conv(ex, p["w"].reshape(3, 3, 1, ce), p["bias"], 2, 1, groups=ce), p))

    p = params["reduce"]
    pat = jax.nn.relu(conv(dw, p["w"][None, None], p["bias"], 1, 0))

    p = params["residual"]
    res = jax.nn.relu(bn_apply(conv(stem, p["w"][None, None], p["bias"], 2, 0), p))

    blk = pat + res
    p = params["head"]
    return blk.reshape(blk.shape[0], -1) @ p["w"] + p["bias"]


# --------------------------- deterministic init -----------------------------

def init_params(key, cin=4, c_stem=8, expand_ratio=2, c_out=8, hw=16, labels=10):
    c_exp = expand_ratio * c_stem
    ks = jax.random.split(key, 16)

    def w(k, shape, fan_in):
        return jax.random.normal(k, shape, jnp.float32) / jnp.sqrt(float(fan_in))

    def bn(k, c):
        k1, k2, k3, k4 = jax.random.split(k, 4)
        return dict(bn_gamma=1.0 + 0.1 * jax.random.normal(k1, (c,), jnp.float32),
                    bn_beta=0.1 * jax.random.normal(k2, (c,), jnp.float32),
                    bn_mean=0.1 * jax.random.normal(k3, (c,), jnp.float32),
                    bn_var=1.0 + 0.1 * jax.random.uniform(k4, (c,), jnp.float32))

    Ho = Wo = hw // 2
    params = {
        "stem": dict(w=w(ks[0], (3, 3, cin, c_stem), 9 * cin),
                     bias=0.1 * jax.random.normal(ks[1], (c_stem,), jnp.float32),
                     **bn(ks[2], c_stem)),
        "expand": dict(w=w(ks[3], (c_stem, c_exp), c_stem),
                       bias=0.1 * jax.random.normal(ks[4], (c_exp,), jnp.float32),
                       **bn(ks[5], c_exp)),
        "dw": dict(w=w(ks[6], (9, c_exp), 9),
                   bias=0.1 * jax.random.normal(ks[7], (c_exp,), jnp.float32),
                   **bn(ks[8], c_exp)),
        "reduce": dict(w=w(ks[9], (c_exp, c_out), c_exp),
                       bias=0.1 * jax.random.normal(ks[10], (c_out,), jnp.float32)),
        "residual": dict(w=w(ks[11], (c_stem, c_out), c_stem),
                         bias=0.1 * jax.random.normal(ks[12], (c_out,), jnp.float32),
                         **bn(ks[13], c_out)),
        "head": dict(w=w(ks[14], (c_out * Ho * Wo, labels), c_out * Ho * Wo),
                     bias=0.1 * jax.random.normal(ks[15], (labels,), jnp.float32)),
    }
    return params


if __name__ == "__main__":
    key = jax.random.PRNGKey(0)
    kx, kp = jax.random.split(key)
    x = jax.random.normal(kx, (2, 4, 16, 16), jnp.float32)   # NCHW like PyTorch
    params = init_params(kp)

    fwd = jax.jit(searchspace_forward)
    out = fwd(x, params)
    jax.block_until_ready(out)
    assert out.shape == (2, 10) and out.dtype == jnp.float32

    # tolerance-asserted pure-JAX reference (bf16 MXU inputs => ~1e-2 rel diffs)
    ref = reference_forward(x, params)
    np.testing.assert_allclose(np.asarray(out), np.asarray(ref), rtol=0.1, atol=0.1)

    print("KERNEL_OK")
</pallas_src>

<mosaic_0001>
module attributes {stable_mosaic.version = 11 : i64} {
  func.func @kernel(%arg0: i32, %arg1: memref<40x1152xbf16, #tpu.memory_space<vmem>>, %arg2: memref<40x40xf32, #tpu.memory_space<vmem>>, %arg3: memref<16x8xf32, #tpu.memory_space<vmem>>, %arg4: memref<16x1152xf32, #tpu.memory_space<vmem>>, %arg5: memref<8x10x128xf32, #tpu.memory_space<vmem>>, %arg6: memref<2x128xf32, #tpu.memory_space<vmem>>, %arg7: memref<1x10xf32, #tpu.memory_space<vmem>>, %arg8: memref<2x10xf32, #tpu.memory_space<vmem>>) attributes {dimension_semantics = [#tpu.dimension_semantics<arbitrary>], iteration_bounds = array<i64: 1>, scalar_prefetch = 0 : i64, scratch_operands = 0 : i64, tpu.core_type = #tpu.core_type<tc>, window_params = [{pipeline_mode = #tpu.pipeline_mode<synchronous>, transform_indices = @transform_0, window_bounds = array<i64: 40, 1152>}, {pipeline_mode = #tpu.pipeline_mode<synchronous>, transform_indices = @transform_1, window_bounds = array<i64: 40, 40>}, {pipeline_mode = #tpu.pipeline_mode<synchronous>, transform_indices = @transform_2, window_bounds = array<i64: 16, 8>}, {pipeline_mode = #tpu.pipeline_mode<synchronous>, transform_indices = @transform_3, window_bounds = array<i64: 16, 1152>}, {pipeline_mode = #tpu.pipeline_mode<synchronous>, transform_indices = @transform_4, window_bounds = array<i64: 8, 10, 128>}, {pipeline_mode = #tpu.pipeline_mode<synchronous>, transform_indices = @transform_5, window_bounds = array<i64: 2, 128>}, {pipeline_mode = #tpu.pipeline_mode<synchronous>, transform_indices = @transform_6, window_bounds = array<i64: 1, 10>}, {pipeline_mode = #tpu.pipeline_mode<synchronous>, transform_indices = @transform_7, window_bounds = array<i64: 2, 10>}]} {
    %c0 = arith.constant 0 : index
    %c0_0 = arith.constant 0 : index
    %0 = vector.load %arg2[%c0, %c0_0] : memref<40x40xf32, #tpu.memory_space<vmem>>, vector<40x40xf32>
    %1 = vector.extract_strided_slice %0 {offsets = [0, 0], sizes = [8, 40], strides = [1, 1]} : vector<40x40xf32> to vector<8x40xf32>
    %2 = arith.truncf %1 : vector<8x40xf32> to vector<8x40xbf16>
    %3 = vector.extract_strided_slice %0 {offsets = [8, 0], sizes = [16, 8], strides = [1, 1]} : vector<40x40xf32> to vector<16x8xf32>
    %4 = arith.truncf %3 : vector<16x8xf32> to vector<16x8xbf16>
    %5 = vector.extract_strided_slice %0 {offsets = [24, 0], sizes = [8, 16], strides = [1, 1]} : vector<40x40xf32> to vector<8x16xf32>
    %6 = arith.truncf %5 : vector<8x16xf32> to vector<8x16xbf16>
    %7 = vector.extract_strided_slice %0 {offsets = [32, 0], sizes = [8, 8], strides = [1, 1]} : vector<40x40xf32> to vector<8x8xf32>
    %8 = arith.truncf %7 : vector<8x8xf32> to vector<8x8xbf16>
    %c0_1 = arith.constant 0 : index
    %c0_2 = arith.constant 0 : index
    %9 = vector.load %arg3[%c0_1, %c0_2] : memref<16x8xf32, #tpu.memory_space<vmem>>, vector<16x8xf32>
    %10 = vector.extract_strided_slice %9 {offsets = [0, 0], sizes = [8, 1], strides = [1, 1]} : vector<16x8xf32> to vector<8x1xf32>
    %11 = vector.extract_strided_slice %9 {offsets = [0, 1], sizes = [16, 1], strides = [1, 1]} : vector<16x8xf32> to vector<16x1xf32>
    %12 = vector.extract_strided_slice %9 {offsets = [0, 2], sizes = [16, 1], strides = [1, 1]} : vector<16x8xf32> to vector<16x1xf32>
    %13 = vector.extract_strided_slice %9 {offsets = [0, 3], sizes = [8, 1], strides = [1, 1]} : vector<16x8xf32> to vector<8x1xf32>
    %14 = vector.extract_strided_slice %9 {offsets = [0, 4], sizes = [8, 1], strides = [1, 1]} : vector<16x8xf32> to vector<8x1xf32>
    %c0_3 = arith.constant 0 : index
    %c0_4 = arith.constant 0 : index
    %15 = vector.load %arg1[%c0_3, %c0_4] : memref<40x1152xbf16, #tpu.memory_space<vmem>>, vector<40x1152xbf16>
    %cst = arith.constant dense<0.000000e+00> : vector<8x1152xf32>
    %16 = tpu.matmul %2, %15, %cst {dimension_numbers = #tpu.dot_dimension_numbers<[1], [0], [0], [1], [0, 0, 1, 1], [], []>} : vector<8x40xbf16>, vector<40x1152xbf16>, vector<8x1152xf32> -> vector<8x1152xf32>
    %17 = vector.broadcast %10 : vector<8x1xf32> to vector<8x1152xf32>
    %18 = arith.addf %16, %17 : vector<8x1152xf32>
    %cst_5 = arith.constant 0.000000e+00 : f32
    %19 = vector.broadcast %cst_5 : f32 to vector<8x1152xf32>
    %20 = arith.maximumf %18, %19 : vector<8x1152xf32>
    %21 = vector.extract_strided_slice %20 {offsets = [0, 512], sizes = [8, 128], strides = [1, 1]} : vector<8x1152xf32> to vector<8x128xf32>
    %22 = arith.truncf %21 : vector<8x128xf32> to vector<8x128xbf16>
    %23 = arith.truncf %20 : vector<8x1152xf32> to vector<8x1152xbf16>
    %cst_6 = arith.constant dense<0.000000e+00> : vector<16x1152xf32>
    %24 = tpu.matmul %4, %23, %cst_6 {dimension_numbers = #tpu.dot_dimension_numbers<[1], [0], [0], [1], [0, 0, 1, 1], [], []>} : vector<16x8xbf16>, vector<8x1152xbf16>, vector<16x1152xf32> -> vector<16x1152xf32>
    %25 = vector.broadcast %11 : vector<16x1xf32> to vector<16x1152xf32>
    %26 = arith.addf %24, %25 : vector<16x1152xf32>
    %cst_7 = arith.constant 0.000000e+00 : f32
    %27 = vector.broadcast %cst_7 : f32 to vector<16x1152xf32>
    %28 = arith.maximumf %26, %27 : vector<16x1152xf32>
    %c0_8 = arith.constant 0 : index
    %c0_9 = arith.constant 0 : index
    %29 = vector.load %arg4[%c0_8, %c0_9] : memref<16x1152xf32, #tpu.memory_space<vmem>>, vector<16x1152xf32>
    %30 = arith.mulf %28, %29 : vector<16x1152xf32>
    %31 = vector.extract_strided_slice %30 {offsets = [0, 0], sizes = [16, 128], strides = [1, 1]} : vector<16x1152xf32> to vector<16x128xf32>
    %32 = vector.extract_strided_slice %30 {offsets = [0, 128], sizes = [16, 128], strides = [1, 1]} : vector<16x1152xf32> to vector<16x128xf32>
    %33 = arith.addf %31, %32 : vector<16x128xf32>
    %34 = vector.extract_strided_slice %30 {offsets = [0, 256], sizes = [16, 128], strides = [1, 1]} : vector<16x1152xf32> to vector<16x128xf32>
    %35 = arith.addf %33, %34 : vector<16x128xf32>
    %36 = vector.extract_strided_slice %30 {offsets = [0, 384], sizes = [16, 128], strides = [1, 1]} : vector<16x1152xf32> to vector<16x128xf32>
    %37 = arith.addf %35, %36 : vector<16x128xf32>
    %38 = vector.extract_strided_slice %30 {offsets = [0, 512], sizes = [16, 128], strides = [1, 1]} : vector<16x1152xf32> to vector<16x128xf32>
    %39 = arith.addf %37, %38 : vector<16x128xf32>
    %40 = vector.extract_strided_slice %30 {offsets = [0, 640], sizes = [16, 128], strides = [1, 1]} : vector<16x1152xf32> to vector<16x128xf32>
    %41 = arith.addf %39, %40 : vector<16x128xf32>
    %42 = vector.extract_strided_slice %30 {offsets = [0, 768], sizes = [16, 128], strides = [1, 1]} : vector<16x1152xf32> to vector<16x128xf32>
    %43 = arith.addf %41, %42 : vector<16x128xf32>
    %44 = vector.extract_strided_slice %30 {offsets = [0, 896], sizes = [16, 128], strides = [1, 1]} : vector<16x1152xf32> to vector<16x128xf32>
    %45 = arith.addf %43, %44 : vector<16x128xf32>
    %46 = vector.extract_strided_slice %30 {offsets = [0, 1024], sizes = [16, 128], strides = [1, 1]} : vector<16x1152xf32> to vector<16x128xf32>
    %47 = arith.addf %45, %46 : vector<16x128xf32>
    %48 = vector.broadcast %12 : vector<16x1xf32> to vector<16x128xf32>
    %49 = arith.addf %47, %48 : vector<16x128xf32>
    %cst_10 = arith.constant 0.000000e+00 : f32
    %50 = vector.broadcast %cst_10 : f32 to vector<16x128xf32>
    %51 = arith.maximumf %49, %50 : vector<16x128xf32>
    %52 = arith.truncf %51 : vector<16x128xf32> to vector<16x128xbf16>
    %cst_11 = arith.constant dense<0.000000e+00> : vector<8x128xf32>
    %53 = tpu.matmul %6, %52, %cst_11 {dimension_numbers = #tpu.dot_dimension_numbers<[1], [0], [0], [1], [0, 0, 1, 1], [], []>} : vector<8x16xbf16>, vector<16x128xbf16>, vector<8x128xf32> -> vector<8x128xf32>
    %54 = vector.broadcast %13 : vector<8x1xf32> to vector<8x128xf32>
    %55 = arith.addf %53, %54 : vector<8x128xf32>
    %cst_12 = arith.constant 0.000000e+00 : f32
    %56 = vector.broadcast %cst_12 : f32 to vector<8x128xf32>
    %57 = arith.maximumf %55, %56 : vector<8x128xf32>
    %cst_13 = arith.constant dense<0.000000e+00> : vector<8x128xf32>
    %58 = tpu.matmul %8, %22, %cst_13 {dimension_numbers = #tpu.dot_dimension_numbers<[1], [0], [0], [1], [0, 0, 1, 1], [], []>} : vector<8x8xbf16>, vector<8x128xbf16>, vector<8x128xf32> -> vector<8x128xf32>
    %59 = vector.broadcast %14 : vector<8x1xf32> to vector<8x128xf32>
    %60 = arith.addf %58, %59 : vector<8x128xf32>
    %cst_14 = arith.constant 0.000000e+00 : f32
    %61 = vector.broadcast %cst_14 : f32 to vector<8x128xf32>
    %62 = arith.maximumf %60, %61 : vector<8x128xf32>
    %63 = arith.addf %57, %62 : vector<8x128xf32>
    %64 = vector.extract_strided_slice %63 {offsets = [0, 0], sizes = [1, 128], strides = [1, 1]} : vector<8x128xf32> to vector<1x128xf32>
    %c0_15 = arith.constant 0 : index
    %c0_16 = arith.constant 0 : index
    %c0_17 = arith.constant 0 : index
    %65 = vector.load %arg5[%c0_15, %c0_16, %c0_17] : memref<8x10x128xf32, #tpu.memory_space<vmem>>, vector<1x10x128xf32>
    %66 = vector.shape_cast %65 : vector<1x10x128xf32> to vector<10x128xf32>
    %67 = vector.broadcast %64 : vector<1x128xf32> to vector<10x128xf32>
    %68 = arith.mulf %67, %66 : vector<10x128xf32>
    %69 = vector.extract_strided_slice %63 {offsets = [1, 0], sizes = [1, 128], strides = [1, 1]} : vector<8x128xf32> to vector<1x128xf32>
    %c1 = arith.constant 1 : index
    %c0_18 = arith.constant 0 : index
    %c0_19 = arith.constant 0 : index
    %70 = vector.load %arg5[%c1, %c0_18, %c0_19] : memref<8x10x128xf32, #tpu.memory_space<vmem>>, vector<1x10x128xf32>
    %71 = vector.shape_cast %70 : vector<1x10x128xf32> to vector<10x128xf32>
    %72 = vector.broadcast %69 : vector<1x128xf32> to vector<10x128xf32>
    %73 = arith.mulf %72, %71 : vector<10x128xf32>
    %74 = arith.addf %68, %73 : vector<10x128xf32>
    %75 = vector.extract_strided_slice %63 {offsets = [2, 0], sizes = [1, 128], strides = [1, 1]} : vector<8x128xf32> to vector<1x128xf32>
    %c2 = arith.constant 2 : index
    %c0_20 = arith.constant 0 : index
    %c0_21 = arith.constant 0 : index
    %76 = vector.load %arg5[%c2, %c0_20, %c0_21] : memref<8x10x128xf32, #tpu.memory_space<vmem>>, vector<1x10x128xf32>
    %77 = vector.shape_cast %76 : vector<1x10x128xf32> to vector<10x128xf32>
    %78 = vector.broadcast %75 : vector<1x128xf32> to vector<10x128xf32>
    %79 = arith.mulf %78, %77 : vector<10x128xf32>
    %80 = arith.addf %74, %79 : vector<10x128xf32>
    %81 = vector.extract_strided_slice %63 {offsets = [3, 0], sizes = [1, 128], strides = [1, 1]} : vector<8x128xf32> to vector<1x128xf32>
    %c3 = arith.constant 3 : index
    %c0_22 = arith.constant 0 : index
    %c0_23 = arith.constant 0 : index
    %82 = vector.load %arg5[%c3, %c0_22, %c0_23] : memref<8x10x128xf32, #tpu.memory_space<vmem>>, vector<1x10x128xf32>
    %83 = vector.shape_cast %82 : vector<1x10x128xf32> to vector<10x128xf32>
    %84 = vector.broadcast %81 : vector<1x128xf32> to vector<10x128xf32>
    %85 = arith.mulf %84, %83 : vector<10x128xf32>
    %86 = arith.addf %80, %85 : vector<10x128xf32>
    %87 = vector.extract_strided_slice %63 {offsets = [4, 0], sizes = [1, 128], strides = [1, 1]} : vector<8x128xf32> to vector<1x128xf32>
    %c4 = arith.constant 4 : index
    %c0_24 = arith.constant 0 : index
    %c0_25 = arith.constant 0 : index
    %88 = vector.load %arg5[%c4, %c0_24, %c0_25] : memref<8x10x128xf32, #tpu.memory_space<vmem>>, vector<1x10x128xf32>
    %89 = vector.shape_cast %88 : vector<1x10x128xf32> to vector<10x128xf32>
    %90 = vector.broadcast %87 : vector<1x128xf32> to vector<10x128xf32>
    %91 = arith.mulf %90, %89 : vector<10x128xf32>
    %92 = arith.addf %86, %91 : vector<10x128xf32>
    %93 = vector.extract_strided_slice %63 {offsets = [5, 0], sizes = [1, 128], strides = [1, 1]} : vector<8x128xf32> to vector<1x128xf32>
    %c5 = arith.constant 5 : index
    %c0_26 = arith.constant 0 : index
    %c0_27 = arith.constant 0 : index
    %94 = vector.load %arg5[%c5, %c0_26, %c0_27] : memref<8x10x128xf32, #tpu.memory_space<vmem>>, vector<1x10x128xf32>
    %95 = vector.shape_cast %94 : vector<1x10x128xf32> to vector<10x128xf32>
    %96 = vector.broadcast %93 : vector<1x128xf32> to vector<10x128xf32>
    %97 = arith.mulf %96, %95 : vector<10x128xf32>
    %98 = arith.addf %92, %97 : vector<10x128xf32>
    %99 = vector.extract_strided_slice %63 {offsets = [6, 0], sizes = [1, 128], strides = [1, 1]} : vector<8x128xf32> to vector<1x128xf32>
    %c6 = arith.constant 6 : index
    %c0_28 = arith.constant 0 : index
    %c0_29 = arith.constant 0 : index
    %100 = vector.load %arg5[%c6, %c0_28, %c0_29] : memref<8x10x128xf32, #tpu.memory_space<vmem>>, vector<1x10x128xf32>
    %101 = vector.shape_cast %100 : vector<1x10x128xf32> to vector<10x128xf32>
    %102 = vector.broadcast %99 : vector<1x128xf32> to vector<10x128xf32>
    %103 = arith.mulf %102, %101 : vector<10x128xf32>
    %104 = arith.addf %98, %103 : vector<10x128xf32>
    %105 = vector.extract_strided_slice %63 {offsets = [7, 0], sizes = [1, 128], strides = [1, 1]} : vector<8x128xf32> to vector<1x128xf32>
    %c7 = arith.constant 7 : index
    %c0_30 = arith.constant 0 : index
    %c0_31 = arith.constant 0 : index
    %106 = vector.load %arg5[%c7, %c0_30, %c0_31] : memref<8x10x128xf32, #tpu.memory_space<vmem>>, vector<1x10x128xf32>
    %107 = vector.shape_cast %106 : vector<1x10x128xf32> to vector<10x128xf32>
    %108 = vector.broadcast %105 : vector<1x128xf32> to vector<10x128xf32>
    %109 = arith.mulf %108, %107 : vector<10x128xf32>
    %110 = arith.addf %104, %109 : vector<10x128xf32>
    %c0_32 = arith.constant 0 : index
    %c0_33 = arith.constant 0 : index
    %111 = vector.load %arg6[%c0_32, %c0_33] : memref<2x128xf32, #tpu.memory_space<vmem>>, vector<2x128xf32>
    %cst_34 = arith.constant dense<0.000000e+00> : vector<2x10xf32>
    %112 = tpu.matmul %111, %110, %cst_34 {dimension_numbers = #tpu.dot_dimension_numbers<[1], [1], [0], [0], [0, 0, 1, 0], [], []>} : vector<2x128xf32>, vector<10x128xf32>, vector<2x10xf32> -> vector<2x10xf32>
    %c0_35 = arith.constant 0 : index
    %c0_36 = arith.constant 0 : index
    %113 = vector.load %arg7[%c0_35, %c0_36] : memref<1x10xf32, #tpu.memory_space<vmem>>, vector<1x10xf32>
    %114 = vector.broadcast %113 : vector<1x10xf32> to vector<2x10xf32>
    %115 = arith.addf %112, %114 : vector<2x10xf32>
    %c0_37 = arith.constant 0 : index
    %c0_38 = arith.constant 0 : index
    %116 = vector.load %arg8[%c0_37, %c0_38] : memref<2x10xf32, #tpu.memory_space<vmem>>, vector<2x10xf32>
    tpu.vector_store %arg8[%c0_37, %c0_38], %115 {strides = array<i32>} : memref<2x10xf32, #tpu.memory_space<vmem>>, vector<2x10xf32>,
    return
  }
  func.func @transform_0(%arg0: i32) -> (i32, i32) {
    %c0_i32 = arith.constant 0 : i32
    %c0_i32_0 = arith.constant 0 : i32
    %c0_i32_1 = arith.constant 0 : i32
    return %c0_i32, %c0_i32_0 : i32, i32
  }
  func.func @transform_1(%arg0: i32) -> (i32, i32) {
    %c0_i32 = arith.constant 0 : i32
    %c0_i32_0 = arith.constant 0 : i32
    %c0_i32_1 = arith.constant 0 : i32
    return %c0_i32, %c0_i32_0 : i32, i32
  }
  func.func @transform_2(%arg0: i32) -> (i32, i32) {
    %c0_i32 = arith.constant 0 : i32
    %c0_i32_0 = arith.constant 0 : i32
    %c0_i32_1 = arith.constant 0 : i32
    return %c0_i32, %c0_i32_0 : i32, i32
  }
  func.func @transform_3(%arg0: i32) -> (i32, i32) {
    %c0_i32 = arith.constant 0 : i32
    %c0_i32_0 = arith.constant 0 : i32
    %c0_i32_1 = arith.constant 0 : i32
    return %c0_i32, %c0_i32_0 : i32, i32
  }
  func.func @transform_4(%arg0: i32) -> (i32, i32, i32) {
    %c0_i32 = arith.constant 0 : i32
    %c0_i32_0 = arith.constant 0 : i32
    %c0_i32_1 = arith.constant 0 : i32
    %c0_i32_2 = arith.constant 0 : i32
    return %c0_i32, %c0_i32_0, %c0_i32_1 : i32, i32, i32
  }
  func.func @transform_5(%arg0: i32) -> (i32, i32) {
    %c0_i32 = arith.constant 0 : i32
    %c0_i32_0 = arith.constant 0 : i32
    %c0_i32_1 = arith.constant 0 : i32
    return %c0_i32, %c0_i32_0 : i32, i32
  }
  func.func @transform_6(%arg0: i32) -> (i32, i32) {
    %c0_i32 = arith.constant 0 : i32
    %c0_i32_0 = arith.constant 0 : i32
    %c0_i32_1 = arith.constant 0 : i32
    return %c0_i32, %c0_i32_0 : i32, i32
  }
  func.func @transform_7(%arg0: i32) -> (i32, i32) {
    %c0_i32 = arith.constant 0 : i32
    %c0_i32_0 = arith.constant 0 : i32
    %c0_i32_1 = arith.constant 0 : i32
    return %c0_i32, %c0_i32_0 : i32, i32
  }
}

</mosaic_0001>

<llo_original>
// kernel: tile.9
$region0: #{tile.9}
  %s0 = inlined_call_operand.vmem [shape: f32[8,10,2,64], index: 0, kind: input, shape index: {}]
  %s1 = inlined_call_operand.vmem [shape: f32[8,10,128], index: 1, kind: output, shape index: {}]
  $region1: #{tile.9} parent=0
    #allocation0 [shape = 'u8[327680]{0}', space=vmem, size = 0x50000, scoped, tag = 'scoped mem for input reshape']
    %s3 = ssub.s32 4, 1
    %s4 = scalar_lea.vmem %s0, 158
    %v5 = vld [vmem:[%s4] sm:%s3]
    %s6 = scalar_lea.vmem [#allocation0], 632
    %7 = vst [vmem:[%s6] sm:%s3] %v5
    %s8 = scalar_lea.vmem %s0, 156
    %v9 = vld [vmem:[%s8] sm:%s3]
    %s10 = scalar_lea.vmem [#allocation0], 624
    %11 = vst [vmem:[%s10] sm:%s3] %v9
    %s12 = scalar_lea.vmem %s0, 154
    %v13 = vld [vmem:[%s12] sm:%s3]
    %s14 = scalar_lea.vmem [#allocation0], 616
    %15 = vst [vmem:[%s14] sm:%s3] %v13
    %s16 = scalar_lea.vmem %s0, 152
    %v17 = vld [vmem:[%s16] sm:%s3]
    %s18 = scalar_lea.vmem [#allocation0], 608
    %19 = vst [vmem:[%s18] sm:%s3] %v17
    %s20 = scalar_lea.vmem %s0, 150
    %v21 = vld [vmem:[%s20] sm:%s3]
    %s22 = scalar_lea.vmem [#allocation0], 600
    %23 = vst [vmem:[%s22] sm:%s3] %v21
    %s24 = scalar_lea.vmem %s0, 148
    %v25 = vld [vmem:[%s24] sm:%s3]
    %s26 = scalar_lea.vmem [#allocation0], 592
    %27 = vst [vmem:[%s26] sm:%s3] %v25
    %s28 = scalar_lea.vmem %s0, 146
    %v29 = vld [vmem:[%s28] sm:%s3]
    %s30 = scalar_lea.vmem [#allocation0], 584
    %31 = vst [vmem:[%s30] sm:%s3] %v29
    %s32 = scalar_lea.vmem %s0, 144
    %v33 = vld [vmem:[%s32] sm:%s3]
    %s34 = scalar_lea.vmem [#allocation0], 576
    %35 = vst [vmem:[%s34] sm:%s3] %v33
    %s36 = scalar_lea.vmem %s0, 142
    %v37 = vld [vmem:[%s36] sm:%s3]
    %s38 = scalar_lea.vmem [#allocation0], 568
    %39 = vst [vmem:[%s38] sm:%s3] %v37
    %s40 = scalar_lea.vmem %s0, 140
    %v41 = vld [vmem:[%s40] sm:%s3]
    %s42 = scalar_lea.vmem [#allocation0], 560
    %43 = vst [vmem:[%s42] sm:%s3] %v41
    %s44 = scalar_lea.vmem %s0, 138
    %v45 = vld [vmem:[%s44] sm:%s3]
    %s46 = scalar_lea.vmem [#allocation0], 552
    %47 = vst [vmem:[%s46] sm:%s3] %v45
    %s48 = scalar_lea.vmem %s0, 136
    %v49 = vld [vmem:[%s48] sm:%s3]
    %s50 = scalar_lea.vmem [#allocation0], 544
    %51 = vst [vmem:[%s50] sm:%s3] %v49
    %s52 = scalar_lea.vmem %s0, 134
    %v53 = vld [vmem:[%s52] sm:%s3]
    %s54 = scalar_lea.vmem [#allocation0], 536
    %55 = vst [vmem:[%s54] sm:%s3] %v53
    %s56 = scalar_lea.vmem %s0, 132
    %v57 = vld [vmem:[%s56] sm:%s3]
    %s58 = scalar_lea.vmem [#allocation0], 528
    %59 = vst [vmem:[%s58] sm:%s3] %v57
    %s60 = scalar_lea.vmem %s0, 130
    %v61 = vld [vmem:[%s60] sm:%s3]
    %s62 = scalar_lea.vmem [#allocation0], 520
    %63 = vst [vmem:[%s62] sm:%s3] %v61
    %s64 = scalar_lea.vmem %s0, 128
    %v65 = vld [vmem:[%s64] sm:%s3]
    %s66 = scalar_lea.vmem [#allocation0], 512
    %67 = vst [vmem:[%s66] sm:%s3] %v65
    %s68 = scalar_lea.vmem %s0, 126
    %v69 = vld [vmem:[%s68] sm:%s3]
    %s70 = scalar_lea.vmem [#allocation0], 504
    %71 = vst [vmem:[%s70] sm:%s3] %v69
    %s72 = scalar_lea.vmem %s0, 124
    %v73 = vld [vmem:[%s72] sm:%s3]
    %s74 = scalar_lea.vmem [#allocation0], 496
    %75 = vst [vmem:[%s74] sm:%s3] %v73
    %s76 = scalar_lea.vmem %s0, 122
    %v77 = vld [vmem:[%s76] sm:%s3]
    %s78 = scalar_lea.vmem [#allocation0], 488
    %79 = vst [vmem:[%s78] sm:%s3] %v77
    %s80 = scalar_lea.vmem %s0, 120
    %v81 = vld [vmem:[%s80] sm:%s3]
    %s82 = scalar_lea.vmem [#allocation0], 480
    %83 = vst [vmem:[%s82] sm:%s3] %v81
    %s84 = scalar_lea.vmem %s0, 118
    %v85 = vld [vmem:[%s84] sm:%s3]
    %s86 = scalar_lea.vmem [#allocation0], 472
    %87 = vst [vmem:[%s86] sm:%s3] %v85
    %s88 = scalar_lea.vmem %s0, 116
    %v89 = vld [vmem:[%s88] sm:%s3]
    %s90 = scalar_lea.vmem [#allocation0], 464
    %91 = vst [vmem:[%s90] sm:%s3] %v89
    %s92 = scalar_lea.vmem %s0, 114
    %v93 = vld [vmem:[%s92] sm:%s3]
    %s94 = scalar_lea.vmem [#allocation0], 456
    %95 = vst [vmem:[%s94] sm:%s3] %v93
    %s96 = scalar_lea.vmem %s0, 112
    %v97 = vld [vmem:[%s96] sm:%s3]
    %s98 = scalar_lea.vmem [#allocation0], 448
    %99 = vst [vmem:[%s98] sm:%s3] %v97
    %s100 = scalar_lea.vmem %s0, 110
    %v101 = vld [vmem:[%s100] sm:%s3]
    %s102 = scalar_lea.vmem [#allocation0], 440
    %103 = vst [vmem:[%s102] sm:%s3] %v101
    %s104 = scalar_lea.vmem %s0, 108
    %v105 = vld [vmem:[%s104] sm:%s3]
    %s106 = scalar_lea.vmem [#allocation0], 432
    %107 = vst [vmem:[%s106] sm:%s3] %v105
    %s108 = scalar_lea.vmem %s0, 106
    %v109 = vld [vmem:[%s108] sm:%s3]
    %s110 = scalar_lea.vmem [#allocation0], 424
    %111 = vst [vmem:[%s110] sm:%s3] %v109
    %s112 = scalar_lea.vmem %s0, 104
    %v113 = vld [vmem:[%s112] sm:%s3]
    %s114 = scalar_lea.vmem [#allocation0], 416
    %115 = vst [vmem:[%s114] sm:%s3] %v113
    %s116 = scalar_lea.vmem %s0, 102
    %v117 = vld [vmem:[%s116] sm:%s3]
    %s118 = scalar_lea.vmem [#allocation0], 408
    %119 = vst [vmem:[%s118] sm:%s3] %v117
    %s120 = scalar_lea.vmem %s0, 100
    %v121 = vld [vmem:[%s120] sm:%s3]
    %s122 = scalar_lea.vmem [#allocation0], 400
    %123 = vst [vmem:[%s122] sm:%s3] %v121
    %s124 = scalar_lea.vmem %s0, 98
    %v125 = vld [vmem:[%s124] sm:%s3]
    %s126 = scalar_lea.vmem [#allocation0], 392
    %127 = vst [vmem:[%s126] sm:%s3] %v125
    %s128 = scalar_lea.vmem %s0, 96
    %v129 = vld [vmem:[%s128] sm:%s3]
    %s130 = scalar_lea.vmem [#allocation0], 384
    %131 = vst [vmem:[%s130] sm:%s3] %v129
    %s132 = scalar_lea.vmem %s0, 94
    %v133 = vld [vmem:[%s132] sm:%s3]
    %s134 = scalar_lea.vmem [#allocation0], 376
    %135 = vst [vmem:[%s134] sm:%s3] %v133
    %s136 = scalar_lea.vmem %s0, 92
    %v137 = vld [vmem:[%s136] sm:%s3]
    %s138 = scalar_lea.vmem [#allocation0], 368
    %139 = vst [vmem:[%s138] sm:%s3] %v137
    %s140 = scalar_lea.vmem %s0, 90
    %v141 = vld [vmem:[%s140] sm:%s3]
    %s142 = scalar_lea.vmem [#allocation0], 360
    %143 = vst [vmem:[%s142] sm:%s3] %v141
    %s144 = scalar_lea.vmem %s0, 88
    %v145 = vld [vmem:[%s144] sm:%s3]
    %s146 = scalar_lea.vmem [#allocation0], 352
    %147 = vst [vmem:[%s146] sm:%s3] %v145
    %s148 = scalar_lea.vmem %s0, 86
    %v149 = vld [vmem:[%s148] sm:%s3]
    %s150 = scalar_lea.vmem [#allocation0], 344
    %151 = vst [vmem:[%s150] sm:%s3] %v149
    %s152 = scalar_lea.vmem %s0, 84
    %v153 = vld [vmem:[%s152] sm:%s3]
    %s154 = scalar_lea.vmem [#allocation0], 336
    %155 = vst [vmem:[%s154] sm:%s3] %v153
    %s156 = scalar_lea.vmem %s0, 82
    %v157 = vld [vmem:[%s156] sm:%s3]
    %s158 = scalar_lea.vmem [#allocation0], 328
    %159 = vst [vmem:[%s158] sm:%s3] %v157
    %s160 = scalar_lea.vmem %s0, 80
    %v161 = vld [vmem:[%s160] sm:%s3]
    %s162 = scalar_lea.vmem [#allocation0], 320
    %163 = vst [vmem:[%s162] sm:%s3] %v161
    %s164 = scalar_lea.vmem %s0, 78
    %v165 = vld [vmem:[%s164] sm:%s3]
    %s166 = scalar_lea.vmem [#allocation0], 312
    %167 = vst [vmem:[%s166] sm:%s3] %v165
    %s168 = scalar_lea.vmem %s0, 76
    %v169 = vld [vmem:[%s168] sm:%s3]
    %s170 = scalar_lea.vmem [#allocation0], 304
    %171 = vst [vmem:[%s170] sm:%s3] %v169
    %s172 = scalar_lea.vmem %s0, 74
    %v173 = vld [vmem:[%s172] sm:%s3]
    %s174 = scalar_lea.vmem [#allocation0], 296
    %175 = vst [vmem:[%s174] sm:%s3] %v173
    %s176 = scalar_lea.vmem %s0, 72
    %v177 = vld [vmem:[%s176] sm:%s3]
    %s178 = scalar_lea.vmem [#allocation0], 288
    %179 = vst [vmem:[%s178] sm:%s3] %v177
    %s180 = scalar_lea.vmem %s0, 70
    %v181 = vld [vmem:[%s180] sm:%s3]
    %s182 = scalar_lea.vmem [#allocation0], 280
    %183 = vst [vmem:[%s182] sm:%s3] %v181
    %s184 = scalar_lea.vmem %s0, 68
    %v185 = vld [vmem:[%s184] sm:%s3]
    %s186 = scalar_lea.vmem [#allocation0], 272
    %187 = vst [vmem:[%s186] sm:%s3] %v185
    %s188 = scalar_lea.vmem %s0, 66
    %v189 = vld [vmem:[%s188] sm:%s3]
    %s190 = scalar_lea.vmem [#allocation0], 264
    %191 = vst [vmem:[%s190] sm:%s3] %v189
    %s192 = scalar_lea.vmem %s0, 64
    %v193 = vld [vmem:[%s192] sm:%s3]
    %s194 = scalar_lea.vmem [#allocation0], 256
    %195 = vst [vmem:[%s194] sm:%s3] %v193
    %s196 = scalar_lea.vmem %s0, 62
    %v197 = vld [vmem:[%s196] sm:%s3]
    %s198 = scalar_lea.vmem [#allocation0], 248
    %199 = vst [vmem:[%s198] sm:%s3] %v197
    %s200 = scalar_lea.vmem %s0, 60
    %v201 = vld [vmem:[%s200] sm:%s3]
    %s202 = scalar_lea.vmem [#allocation0], 240
    %203 = vst [vmem:[%s202] sm:%s3] %v201
    %s204 = scalar_lea.vmem %s0, 58
    %v205 = vld [vmem:[%s204] sm:%s3]
    %s206 = scalar_lea.vmem [#allocation0], 232
    %207 = vst [vmem:[%s206] sm:%s3] %v205
    %s208 = scalar_lea.vmem %s0, 56
    %v209 = vld [vmem:[%s208] sm:%s3]
    %s210 = scalar_lea.vmem [#allocation0], 224
    %211 = vst [vmem:[%s210] sm:%s3] %v209
    %s212 = scalar_lea.vmem %s0, 54
    %v213 = vld [vmem:[%s212] sm:%s3]
    %s214 = scalar_lea.vmem [#allocation0], 216
    %215 = vst [vmem:[%s214] sm:%s3] %v213
    %s216 = scalar_lea.vmem %s0, 52
    %v217 = vld [vmem:[%s216] sm:%s3]
    %s218 = scalar_lea.vmem [#allocation0], 208
    %219 = vst [vmem:[%s218] sm:%s3] %v217
    %s220 = scalar_lea.vmem %s0, 50
    %v221 = vld [vmem:[%s220] sm:%s3]
    %s222 = scalar_lea.vmem [#allocation0], 200
    %223 = vst [vmem:[%s222] sm:%s3] %v221
    %s224 = scalar_lea.vmem %s0, 48
    %v225 = vld [vmem:[%s224] sm:%s3]
    %s226 = scalar_lea.vmem [#allocation0], 192
    %227 = vst [vmem:[%s226] sm:%s3] %v225
    %s228 = scalar_lea.vmem %s0, 46
    %v229 = vld [vmem:[%s228] sm:%s3]
    %s230 = scalar_lea.vmem [#allocation0], 184
    %231 = vst [vmem:[%s230] sm:%s3] %v229
    %s232 = scalar_lea.vmem %s0, 44
    %v233 = vld [vmem:[%s232] sm:%s3]
    %s234 = scalar_lea.vmem [#allocation0], 176
    %235 = vst [vmem:[%s234] sm:%s3] %v233
    %s236 = scalar_lea.vmem %s0, 42
    %v237 = vld [vmem:[%s236] sm:%s3]
    %s238 = scalar_lea.vmem [#allocation0], 168
    %239 = vst [vmem:[%s238] sm:%s3] %v237
    %s240 = scalar_lea.vmem %s0, 40
    %v241 = vld [vmem:[%s240] sm:%s3]
    %s242 = scalar_lea.vmem [#allocation0], 160
    %243 = vst [vmem:[%s242] sm:%s3] %v241
    %s244 = scalar_lea.vmem %s0, 38
    %v245 = vld [vmem:[%s244] sm:%s3]
    %s246 = scalar_lea.vmem [#allocation0], 152
    %247 = vst [vmem:[%s246] sm:%s3] %v245
    %s248 = scalar_lea.vmem %s0, 36
    %v249 = vld [vmem:[%s248] sm:%s3]
    %s250 = scalar_lea.vmem [#allocation0], 144
    %251 = vst [vmem:[%s250] sm:%s3] %v249
    %s252 = scalar_lea.vmem %s0, 34
    %v253 = vld [vmem:[%s252] sm:%s3]
    %s254 = scalar_lea.vmem [#allocation0], 136
    %255 = vst [vmem:[%s254] sm:%s3] %v253
    %s256 = scalar_lea.vmem %s0, 32
    %v257 = vld [vmem:[%s256] sm:%s3]
    %s258 = scalar_lea.vmem [#allocation0], 128
    %259 = vst [vmem:[%s258] sm:%s3] %v257
    %s260 = scalar_lea.vmem %s0, 30
    %v261 = vld [vmem:[%s260] sm:%s3]
    %s262 = scalar_lea.vmem [#allocation0], 120
    %263 = vst [vmem:[%s262] sm:%s3] %v261
    %s264 = scalar_lea.vmem %s0, 28
    %v265 = vld [vmem:[%s264] sm:%s3]
    %s266 = scalar_lea.vmem [#allocation0], 112
    %267 = vst [vmem:[%s266] sm:%s3] %v265
    %s268 = scalar_lea.vmem %s0, 26
    %v269 = vld [vmem:[%s268] sm:%s3]
    %s270 = scalar_lea.vmem [#allocation0], 104
    %271 = vst [vmem:[%s270] sm:%s3] %v269
    %s272 = scalar_lea.vmem %s0, 24
    %v273 = vld [vmem:[%s272] sm:%s3]
    %s274 = scalar_lea.vmem [#allocation0], 96
    %275 = vst [vmem:[%s274] sm:%s3] %v273
    %s276 = scalar_lea.vmem %s0, 22
    %v277 = vld [vmem:[%s276] sm:%s3]
    %s278 = scalar_lea.vmem [#allocation0], 88
    %279 = vst [vmem:[%s278] sm:%s3] %v277
    %s280 = scalar_lea.vmem %s0, 20
    %v281 = vld [vmem:[%s280] sm:%s3]
    %s282 = scalar_lea.vmem [#allocation0], 80
    %283 = vst [vmem:[%s282] sm:%s3] %v281
    %s284 = scalar_lea.vmem %s0, 18
    %v285 = vld [vmem:[%s284] sm:%s3]
    %s286 = scalar_lea.vmem [#allocation0], 72
    %287 = vst [vmem:[%s286] sm:%s3] %v285
    %s288 = scalar_lea.vmem %s0, 16
    %v289 = vld [vmem:[%s288] sm:%s3]
    %s290 = scalar_lea.vmem [#allocation0], 64
    %291 = vst [vmem:[%s290] sm:%s3] %v289
    %s292 = scalar_lea.vmem %s0, 14
    %v293 = vld [vmem:[%s292] sm:%s3]
    %s294 = scalar_lea.vmem [#allocation0], 56
    %295 = vst [vmem:[%s294] sm:%s3] %v293
    %s296 = scalar_lea.vmem %s0, 12
    %v297 = vld [vmem:[%s296] sm:%s3]
    %s298 = scalar_lea.vmem [#allocation0], 48
    %299 = vst [vmem:[%s298] sm:%s3] %v297
    %s300 = scalar_lea.vmem %s0, 10
    %v301 = vld [vmem:[%s300] sm:%s3]
    %s302 = scalar_lea.vmem [#allocation0], 40
    %303 = vst [vmem:[%s302] sm:%s3] %v301
    %s304 = scalar_lea.vmem %s0, 8
    %v305 = vld [vmem:[%s304] sm:%s3]
    %s306 = scalar_lea.vmem [#allocation0], 32
    %307 = vst [vmem:[%s306] sm:%s3] %v305
    %s308 = scalar_lea.vmem %s0, 6
    %v309 = vld [vmem:[%s308] sm:%s3]
    %s310 = scalar_lea.vmem [#allocation0], 24
    %311 = vst [vmem:[%s310] sm:%s3] %v309
    %s312 = scalar_lea.vmem %s0, 4
    %v313 = vld [vmem:[%s312] sm:%s3]
    %s314 = scalar_lea.vmem [#allocation0], 16
    %315 = vst [vmem:[%s314] sm:%s3] %v313
    %s316 = scalar_lea.vmem %s0, 2
    %v317 = vld [vmem:[%s316] sm:%s3]
    %s318 = scalar_lea.vmem [#allocation0], 8
    %319 = vst [vmem:[%s318] sm:%s3] %v317
    %v320 = vld [vmem:[%s0] sm:%s3]
    %321 = vst [vmem:[#allocation0] sm:%s3] %v320
    %v322 = vld [vmem:[#allocation0] ss:$8 sm:$0xf]
    %v323 = vld [vmem:[#allocation0] ss:$8 sm:$0xf0]
    %vm324 = vcmask 1047556
    %v325 = vsel %vm324, %v323, %v322
    %vm326 = vcmask 523264
    %327 = vst.msk [vmem:[%s1] sm:$0xff] %vm326, %v325
    %s328 = scalar_lea.vmem [#allocation0], 64
    %v329 = vld [vmem:[%s328] ss:$8 sm:$0xf]
    %s330 = scalar_lea.vmem [#allocation0], 64
    %v331 = vld [vmem:[%s330] ss:$8 sm:$0xf0]
    %vm332 = vcmask 1047556
    %v333 = vsel %vm332, %v331, %v329
    %vm334 = vcmask 523264
    %s335 = scalar_lea.vmem %s1, 8
    %336 = vst.msk [vmem:[%s335] sm:$0xff] %vm334, %v333
    %s337 = scalar_lea.vmem [#allocation0], 128
    %v338 = vld [vmem:[%s337] ss:$8 sm:$0xf]
    %s339 = scalar_lea.vmem [#allocation0], 128
    %v340 = vld [vmem:[%s339] ss:$8 sm:$0xf0]
    %vm341 = vcmask 1047556
    %v342 = vsel %vm341, %v340, %v338
    %vm343 = vcmask 523264
    %s344 = scalar_lea.vmem %s1, 16
    %345 = vst.msk [vmem:[%s344] sm:$0xff] %vm343, %v342
    %s346 = scalar_lea.vmem [#allocation0], 192
    %v347 = vld [vmem:[%s346] ss:$8 sm:$0xf]
    %s348 = scalar_lea.vmem [#allocation0], 192
    %v349 = vld [vmem:[%s348] ss:$8 sm:$0xf0]
    %vm350 = vcmask 1047556
    %v351 = vsel %vm350, %v349, %v347
    %vm352 = vcmask 523264
    %s353 = scalar_lea.vmem %s1, 24
    %354 = vst.msk [vmem:[%s353] sm:$0xff] %vm352, %v351
    %s355 = scalar_lea.vmem [#allocation0], 256
    %v356 = vld [vmem:[%s355] ss:$8 sm:$0xf]
    %s357 = scalar_lea.vmem [#allocation0], 256
    %v358 = vld [vmem:[%s357] ss:$8 sm:$0xf0]
    %vm359 = vcmask 1047556
    %v360 = vsel %vm359, %v358, %v356
    %vm361 = vcmask 523264
    %s362 = scalar_lea.vmem %s1, 32
    %363 = vst.msk [vmem:[%s362] sm:$0xff] %vm361, %v360
    %s364 = scalar_lea.vmem [#allocation0], 320
    %v365 = vld [vmem:[%s364] ss:$8 sm:$0xf]
    %s366 = scalar_lea.vmem [#allocation0], 320
    %v367 = vld [vmem:[%s366] ss:$8 sm:$0xf0]
    %vm368 = vcmask 1047556
    %v369 = vsel %vm368, %v367, %v365
    %vm370 = vcmask 523264
    %s371 = scalar_lea.vmem %s1, 40
    %372 = vst.msk [vmem:[%s371] sm:$0xff] %vm370, %v369
    %s373 = scalar_lea.vmem [#allocation0], 384
    %v374 = vld [vmem:[%s373] ss:$8 sm:$0xf]
    %s375 = scalar_lea.vmem [#allocation0], 384
    %v376 = vld [vmem:[%s375] ss:$8 sm:$0xf0]
    %vm377 = vcmask 1047556
    %v378 = vsel %vm377, %v376, %v374
    %vm379 = vcmask 523264
    %s380 = scalar_lea.vmem %s1, 48
    %381 = vst.msk [vmem:[%s380] sm:$0xff] %vm379, %v378
    %s382 = scalar_lea.vmem [#allocation0], 448
    %v383 = vld [vmem:[%s382] ss:$8 sm:$0xf]
    %s384 = scalar_lea.vmem [#allocation0], 448
    %v385 = vld [vmem:[%s384] ss:$8 sm:$0xf0]
    %vm386 = vcmask 1047556
    %v387 = vsel %vm386, %v385, %v383
    %vm388 = vcmask 523264
    %s389 = scalar_lea.vmem %s1, 56
    %390 = vst.msk [vmem:[%s389] sm:$0xff] %vm388, %v387
    %s391 = scalar_lea.vmem [#allocation0], 512
    %v392 = vld [vmem:[%s391] ss:$8 sm:$0xf]
    %s393 = scalar_lea.vmem [#allocation0], 512
    %v394 = vld [vmem:[%s393] ss:$8 sm:$0xf0]
    %vm395 = vcmask 1047556
    %v396 = vsel %vm395, %v394, %v392
    %vm397 = vcmask 523264
    %s398 = scalar_lea.vmem %s1, 64
    %399 = vst.msk [vmem:[%s398] sm:$0xff] %vm397, %v396
    %s400 = scalar_lea.vmem [#allocation0], 576
    %v401 = vld [vmem:[%s400] ss:$8 sm:$0xf]
    %s402 = scalar_lea.vmem [#allocation0], 576
    %v403 = vld [vmem:[%s402] ss:$8 sm:$0xf0]
    %vm404 = vcmask 1047556
    %v405 = vsel %vm404, %v403, %v401
    %vm406 = vcmask 523264
    %s407 = scalar_lea.vmem %s1, 72
    %408 = vst.msk [vmem:[%s407] sm:$0xff] %vm406, %v405
    %s409 = scalar_lea.vmem [#allocation0], 1
    %v410 = vld [vmem:[%s409] ss:$8 sm:$0xf]
    %s411 = scalar_lea.vmem [#allocation0], 1
    %v412 = vld [vmem:[%s411] ss:$8 sm:$0xf0]
    %vm413 = vcmask 1047556
    %v414 = vsel %vm413, %v412, %v410
    %415 = vrot.lane.b32.xlu0 %v414, 64
    %v416 = vpop.permute.xlu0 %415
    %vm417 = vcmask 1048064
    %418 = vst.msk [vmem:[%s1] sm:$0xff] %vm417, %v416
    %s419 = scalar_lea.vmem [#allocation0], 257
    %v420 = vld [vmem:[%s419] ss:$8 sm:$0xf]
    %s421 = scalar_lea.vmem [#allocation0], 257
    %v422 = vld [vmem:[%s421] ss:$8 sm:$0xf0]
    %vm423 = vcmask 1047556
    %v424 = vsel %vm423, %v422, %v420
    %425 = vrot.lane.b32.xlu0 %v424, 64
    %v426 = vpop.permute.xlu0 %425
    %vm427 = vcmask 1048064
    %s428 = scalar_lea.vmem %s1, 32
    %429 = vst.msk [vmem:[%s428] sm:$0xff] %vm427, %v426
    %s430 = scalar_lea.vmem [#allocation0], 513
    %v431 = vld [vmem:[%s430] ss:$8 sm:$0xf]
    %s432 = scalar_lea.vmem [#allocation0], 513
    %v433 = vld [vmem:[%s432] ss:$8 sm:$0xf0]
    %vm434 = vcmask 1047556
    %v435 = vsel %vm434, %v433, %v431
    %436 = vrot.lane.b32.xlu0 %v435, 64
    %v437 = vpop.permute.xlu0 %436
    %vm438 = vcmask 1048064
    %s439 = scalar_lea.vmem %s1, 64
    %440 = vst.msk [vmem:[%s439] sm:$0xff] %vm438, %v437
    %s441 = scalar_lea.vmem [#allocation0], 65
    %v442 = vld [vmem:[%s441] ss:$8 sm:$0xf]
    %s443 = scalar_lea.vmem [#allocation0], 65
    %v444 = vld [vmem:[%s443] ss:$8 sm:$0xf0]
    %vm445 = vcmask 1047556
    %v446 = vsel %vm445, %v444, %v442
    %447 = vrot.lane.b32.xlu0 %v446, 64
    %v448 = vpop.permute.xlu0 %447
    %vm449 = vcmask 1048064
    %s450 = scalar_lea.vmem %s1, 8
    %451 = vst.msk [vmem:[%s450] sm:$0xff] %vm449, %v448
    %s452 = scalar_lea.vmem [#allocation0], 321
    %v453 = vld [vmem:[%s452] ss:$8 sm:$0xf]
    %s454 = scalar_lea.vmem [#allocation0], 321
    %v455 = vld [vmem:[%s454] ss:$8 sm:$0xf0]
    %vm456 = vcmask 1047556
    %v457 = vsel %vm456, %v455, %v453
    %458 = vrot.lane.b32.xlu0 %v457, 64
    %v459 = vpop.permute.xlu0 %458
    %vm460 = vcmask 1048064
    %s461 = scalar_lea.vmem %s1, 40
    %462 = vst.msk [vmem:[%s461] sm:$0xff] %vm460, %v459
    %s463 = scalar_lea.vmem [#allocation0], 577
    %v464 = vld [vmem:[%s463] ss:$8 sm:$0xf]
    %s465 = scalar_lea.vmem [#allocation0], 577
    %v466 = vld [vmem:[%s465] ss:$8 sm:$0xf0]
    %vm467 = vcmask 1047556
    %v468 = vsel %vm467, %v466, %v464
    %469 = vrot.lane.b32.xlu0 %v468, 64
    %v470 = vpop.permute.xlu0 %469
    %vm471 = vcmask 1048064
    %s472 = scalar_lea.vmem %s1, 72
    %473 = vst.msk [vmem:[%s472] sm:$0xff] %vm471, %v470
    %s474 = scalar_lea.vmem [#allocation0], 129
    %v475 = vld [vmem:[%s474] ss:$8 sm:$0xf]
    %s476 = scalar_lea.vmem [#allocation0], 129
    %v477 = vld [vmem:[%s476] ss:$8 sm:$0xf0]
    %vm478 = vcmask 1047556
    %v479 = vsel %vm478, %v477, %v475
    %480 = vrot.lane.b32.xlu0 %v479, 64
    %v481 = vpop.permute.xlu0 %480
    %vm482 = vcmask 1048064
    %s483 = scalar_lea.vmem %s1, 16
    %484 = vst.msk [vmem:[%s483] sm:$0xff] %vm482, %v481
    %s485 = scalar_lea.vmem [#allocation0], 385
    %v486 = vld [vmem:[%s485] ss:$8 sm:$0xf]
    %s487 = scalar_lea.vmem [#allocation0], 385
    %v488 = vld [vmem:[%s487] ss:$8 sm:$0xf0]
    %vm489 = vcmask 1047556
    %v490 = vsel %vm489, %v488, %v486
    %491 = vrot.lane.b32.xlu0 %v490, 64
    %v492 = vpop.permute.xlu0 %491
    %vm493 = vcmask 1048064
    %s494 = scalar_lea.vmem %s1, 48
    %495 = vst.msk [vmem:[%s494] sm:$0xff] %vm493, %v492
    %s496 = scalar_lea.vmem [#allocation0], 193
    %v497 = vld [vmem:[%s496] ss:$8 sm:$0xf]
    %s498 = scalar_lea.vmem [#allocation0], 193
    %v499 = vld [vmem:[%s498] ss:$8 sm:$0xf0]
    %vm500 = vcmask 1047556
    %v501 = vsel %vm500, %v499, %v497
    %502 = vrot.lane.b32.xlu0 %v501, 64
    %v503 = vpop.permute.xlu0 %502
    %vm504 = vcmask 1048064
    %s505 = scalar_lea.vmem %s1, 24
    %506 = vst.msk [vmem:[%s505] sm:$0xff] %vm504, %v503
    %s507 = scalar_lea.vmem [#allocation0], 449
    %v508 = vld [vmem:[%s507] ss:$8 sm:$0xf]
    %s509 = scalar_lea.vmem [#allocation0], 449
    %v510 = vld [vmem:[%s509] ss:$8 sm:$0xf0]
    %vm511 = vcmask 1047556
    %v512 = vsel %vm511, %v510, %v508
    %513 = vrot.lane.b32.xlu0 %v512, 64
    %v514 = vpop.permute.xlu0 %513
    %vm515 = vcmask 1048064
    %s516 = scalar_lea.vmem %s1, 56
    %517 = vst.msk [vmem:[%s516] sm:$0xff] %vm515, %v514

// kernel: searchspace_forward.1
$region0: #{searchspace_forward.1}
  #allocation0 [shape = 'u32[]', space=smem, size = 0x4, offset = 0x4, fixed_abs, tag = 'smem constant byte address 0x4 - core index']
  #allocation1 [shape = 'u32[72,128]{1,0:T(1,128)}', space=vmem, size = 0x9000, scoped, tag = 'internal scratch']
  %s0 = inlined_call_operand.vmem [shape: bf16[40,1152], index: 0, kind: input, shape index: {}]
  %s1 = inlined_call_operand.vmem [shape: f32[40,40], index: 1, kind: input, shape index: {}]
  %s2 = inlined_call_operand.vmem [shape: f32[16,8], index: 2, kind: input, shape index: {}]
  %s3 = inlined_call_operand.vmem [shape: f32[16,1152], index: 3, kind: input, shape index: {}]
  %s4 = inlined_call_operand.vmem [shape: f32[8,10,128], index: 4, kind: input, shape index: {}]
  %s5 = inlined_call_operand.vmem [shape: f32[2,128], index: 5, kind: input, shape index: {}]
  %s6 = inlined_call_operand.vmem [shape: f32[1,10], index: 6, kind: input, shape index: {}]
  %s7 = inlined_call_operand.hbm [shape: f32[2,10], index: 7, kind: output, shape index: {}]
  %s8 = sld [smem:[#allocation0]]
  $region38: #{searchspace_forward.1} parent=0
    _
  %s10 = ssub.s32 1, %s8
  %s11 = scalar_select 0, %s10, %s8
  $region1: #{searchspace_forward.1} parent=0
    #allocation2 [shape = 'u8[1024]{0}', space=vmem, size = 0x400, scoped, tag = 'output window, operand 0, single buffered']
    #allocation3 [shape = 's32[1]{0}', space=sflag, size = 0x4, scoped, tag = 'scoped memory for searchspace_forward.1']
    %12 = vsyncpa [#allocation3], 0
    // Predicated region
    $region2: #{searchspace_forward.1} parent=1 // pred_check
      _
    $region3: #{searchspace_forward.1} parent=1 // pred_check_branch
      %14 = sbr.rel (0) target = $region5
    $region4: #{searchspace_forward.1} parent=1 // pred_region
      _
    $region5: #{searchspace_forward.1} parent=1 // pred_fallthru
      _
    // Predicated region
    $region6: #{searchspace_forward.1} parent=1 // pred_check
      _
    $region7: #{searchspace_forward.1} parent=1 // pred_check_branch
      %16 = sbr.rel (0) target = $region9
    $region8: #{searchspace_forward.1} parent=1 // pred_region
      _
    $region9: #{searchspace_forward.1} parent=1 // pred_fallthru
      _
    // Predicated region
    $region10: #{searchspace_forward.1} parent=1 // pred_check
      _
    $region11: #{searchspace_forward.1} parent=1 // pred_check_branch
      %18 = sbr.rel (0) target = $region13
    $region12: #{searchspace_forward.1} parent=1 // pred_region
      _
    $region13: #{searchspace_forward.1} parent=1 // pred_fallthru
      _
    // Predicated region
    $region14: #{searchspace_forward.1} parent=1 // pred_check
      _
    $region15: #{searchspace_forward.1} parent=1 // pred_check_branch
      %20 = sbr.rel (0) target = $region17
    $region16: #{searchspace_forward.1} parent=1 // pred_region
      _
    $region17: #{searchspace_forward.1} parent=1 // pred_fallthru
      _
    // Predicated region
    $region18: #{searchspace_forward.1} parent=1 // pred_check
      _
    $region19: #{searchspace_forward.1} parent=1 // pred_check_branch
      %22 = sbr.rel (0) target = $region21
    $region20: #{searchspace_forward.1} parent=1 // pred_region
      _
    $region21: #{searchspace_forward.1} parent=1 // pred_fallthru
      _
    // Predicated region
    $region22: #{searchspace_forward.1} parent=1 // pred_check
      _
    $region23: #{searchspace_forward.1} parent=1 // pred_check_branch
      %24 = sbr.rel (0) target = $region25
    $region24: #{searchspace_forward.1} parent=1 // pred_region
      _
    $region25: #{searchspace_forward.1} parent=1 // pred_fallthru
      _
    // Predicated region
    $region26: #{searchspace_forward.1} parent=1 // pred_check
      _
    $region27: #{searchspace_forward.1} parent=1 // pred_check_branch
      %26 = sbr.rel (0) target = $region29
    $region28: #{searchspace_forward.1} parent=1 // pred_region
      _
    $region29: #{searchspace_forward.1} parent=1 // pred_fallthru
      _
    %v28 = vld [vmem:[%s1] sm:$0xff]
    %v29 = vld [vmem:[%s1 + $0x8] sm:$0xff]
    %v30 = vld [vmem:[%s1 + $0x10] sm:$0xff]
    %v31 = vld [vmem:[%s1 + $0x18] sm:$0xff]
    %v32 = vld [vmem:[%s1 + $0x20] sm:$0xff]
    %v33 = vpack.c.bf16 %v28, %v28
    %v34 = vpack.c.bf16 %v30, %v29
    %v35 = vpack.c.bf16 %v31, %v31
    %v36 = vpack.c.bf16 %v32, %v32
    %v37 = vld [vmem:[%s2] sm:$0xff]
    %v38 = vld [vmem:[%s2 + $0x8] sm:$0xff]
    %v39 = vld [vmem:[%s0] sm:$0xff]
    %v40 = vld [vmem:[%s0 + $0x8] sm:$0xff]
    %v41 = vld [vmem:[%s0 + $0x10] sm:$0xff]
    %v42 = vld [vmem:[%s0 + $0x18] sm:$0xff]
    %v43 = vld [vmem:[%s0 + $0x20] sm:$0xf]
    %v44 = vld [vmem:[%s0 + $0x24] sm:$0xff]
    %v45 = vld [vmem:[%s0 + $0x2c] sm:$0xff]
    %v46 = vld [vmem:[%s0 + $0x34] sm:$0xff]
    %v47 = vld [vmem:[%s0 + $0x3c] sm:$0xff]
    %v48 = vld [vmem:[%s0 + $0x44] sm:$0xf]
    %v49 = vld [vmem:[%s0 + $0x48] sm:$0xff]
    %v50 = vld [vmem:[%s0 + $0x50] sm:$0xff]
    %v51 = vld [vmem:[%s0 + $0x58] sm:$0xff]
    %v52 = vld [vmem:[%s0 + $0x60] sm:$0xff]
    %v53 = vld [vmem:[%s0 + $0x68] sm:$0xf]
    %v54 = vld [vmem:[%s0 + $0x6c] sm:$0xff]
    %v55 = vld [vmem:[%s0 + $0x74] sm:$0xff]
    %v56 = vld [vmem:[%s0 + $0x7c] sm:$0xff]
    %v57 = vld [vmem:[%s0 + $0x84] sm:$0xff]
    %v58 = vld [vmem:[%s0 + $0x8c] sm:$0xf]
    %v59 = vld [vmem:[%s0 + $0x90] sm:$0xff]
    %v60 = vld [vmem:[%s0 + $0x98] sm:$0xff]
    %v61 = vld [vmem:[%s0 + $0xa0] sm:$0xff]
    %v62 = vld [vmem:[%s0 + $0xa8] sm:$0xff]
    %v63 = vld [vmem:[%s0 + $0xb0] sm:$0xf]
    %65 = vset.pattern.permute.xlu0 0
    %66 = vperm.xlu0 %65, %v37
    %v67 = vpop.permute.xlu0 %66
    %v94 = vunpack.c.l.b16 %v39
    %v95 = vunpack.c.h.b16 %v39
    %v96 = vunpack.c.l.b16 %v40
    %v97 = vunpack.c.h.b16 %v40
    %v98 = vunpack.c.l.b16 %v41
    %v99 = vunpack.c.h.b16 %v41
    %v100 = vunpack.c.l.b16 %v42
    %v101 = vunpack.c.h.b16 %v42
    %v102 = vunpack.c.l.b16 %v43
    %v103 = vunpack.c.l.b16 %v44
    %v104 = vunpack.c.h.b16 %v44
    %v105 = vunpack.c.l.b16 %v45
    %v106 = vunpack.c.h.b16 %v45
    %v107 = vunpack.c.l.b16 %v46
    %v108 = vunpack.c.h.b16 %v46
    %v109 = vunpack.c.l.b16 %v47
    %v110 = vunpack.c.h.b16 %v47
    %v111 = vunpack.c.l.b16 %v48
    %v112 = vunpack.c.l.b16 %v49
    %v113 = vunpack.c.h.b16 %v49
    %v114 = vunpack.c.l.b16 %v50
    %v115 = vunpack.c.h.b16 %v50
    %v116 = vunpack.c.l.b16 %v51
    %v117 = vunpack.c.h.b16 %v51
    %v118 = vunpack.c.l.b16 %v52
    %v119 = vunpack.c.h.b16 %v52
    %v120 = vunpack.c.l.b16 %v53
    %v121 = vunpack.c.l.b16 %v54
    %v122 = vunpack.c.h.b16 %v54
    %v123 = vunpack.c.l.b16 %v55
    %v124 = vunpack.c.h.b16 %v55
    %v125 = vunpack.c.l.b16 %v56
    %v126 = vunpack.c.h.b16 %v56
    %v127 = vunpack.c.l.b16 %v57
    %v128 = vunpack.c.h.b16 %v57
    %v129 = vunpack.c.l.b16 %v58
    %v130 = vunpack.c.l.b16 %v59
    %v131 = vunpack.c.h.b16 %v59
    %v132 = vunpack.c.l.b16 %v60
    %v133 = vunpack.c.h.b16 %v60
    %v134 = vunpack.c.l.b16 %v61
    %v135 = vunpack.c.h.b16 %v61
    %v136 = vunpack.c.l.b16 %v62
    %v137 = vunpack.c.h.b16 %v62
    %v138 = vunpack.c.l.b16 %v63
    %v139 = vpack.c.b16 %v103, %v94
    %v140 = vpack.c.b16 %v104, %v95
    %v141 = vpack.c.b16 %v105, %v96
    %v142 = vpack.c.b16 %v106, %v97
    %v143 = vpack.c.b16 %v107, %v98
    %v144 = vpack.c.b16 %v108, %v99
    %v145 = vpack.c.b16 %v109, %v100
    %v146 = vpack.c.b16 %v110, %v101
    %v147 = vpack.c.b16 %v111, %v102
    %v148 = vpack.c.b16 %v121, %v112
    %v149 = vpack.c.b16 %v122, %v113
    %v150 = vpack.c.b16 %v123, %v114
    %v151 = vpack.c.b16 %v124, %v115
    %v152 = vpack.c.b16 %v125, %v116
    %v153 = vpack.c.b16 %v126, %v117
    %v154 = vpack.c.b16 %v127, %v118
    %v155 = vpack.c.b16 %v128, %v119
    %v156 = vpack.c.b16 %v129, %v120
    %v157 = vpack.c.b16 %v130, %v130
    %v158 = vpack.c.b16 %v131, %v131
    %v159 = vpack.c.b16 %v132, %v132
    %v160 = vpack.c.b16 %v133, %v133
    %v161 = vpack.c.b16 %v134, %v134
    %v162 = vpack.c.b16 %v135, %v135
    %v163 = vpack.c.b16 %v136, %v136
    %v164 = vpack.c.b16 %v137, %v137
    %v165 = vpack.c.b16 %v138, %v138
    %vm184 = vcmask 326656
    %v186 = vsel %vm184, %v33, 0
    %vm188 = vcmask 1043456
    %v190 = vsel %vm188, %v157, 0
    %v193 = vsel %vm188, %v158, 0
    %v196 = vsel %vm188, %v159, 0
    %v199 = vsel %vm188, %v160, 0
    %v202 = vsel %vm188, %v161, 0
    %v205 = vsel %vm188, %v162, 0
    %v208 = vsel %vm188, %v163, 0
    %v211 = vsel %vm188, %v164, 0
    %v214 = vsel %vm188, %v165, 0
    %216 = vmatpush.bf16.msra.mxu0 0
    %217 = vmatpush.bf16.msra.mxu0 0
    %218 = vmatpush.bf16.msra.mxu0 0
    %219 = vmatpush.bf16.msra.mxu0 0
    %220 = vmatpush.bf16.msra.mxu0 0
    %221 = vmatpush.bf16.msra.mxu0 %v190
    %222 = vmatpush.bf16.msra.mxu0 %v148
    %223 = vmatpush.bf16.msra.mxu0 %v139
    %224 = vmatmul.bf16.gmra.mxu0 %v186
    %v225 = vpop.f32.mrf.mxu0
    %v226 = vadd.f32 %v67, %v225
    %v227 = vpop.f32.mrf.mxu0
    %228 = vdwg.mxu0
    %229 = vmatpush.bf16.msra.mxu0 0
    %230 = vmatpush.bf16.msra.mxu0 0
    %231 = vmatpush.bf16.msra.mxu0 0
    %232 = vmatpush.bf16.msra.mxu0 0
    %233 = vmatpush.bf16.msra.mxu0 0
    %234 = vmatpush.bf16.msra.mxu0 %v193
    %235 = vmatpush.bf16.msra.mxu0 %v149
    %236 = vmatpush.bf16.msra.mxu0 %v140
    %237 = vmatmul.bf16.gmra.mxu0 %v186
    %v238 = vpop.f32.mrf.mxu0
    %v239 = vadd.f32 %v67, %v238
    %v240 = vpop.f32.mrf.mxu0
    %241 = vdwg.mxu0
    %242 = vmatpush.bf16.msra.mxu0 0
    %243 = vmatpush.bf16.msra.mxu0 0
    %244 = vmatpush.bf16.msra.mxu0 0
    %245 = vmatpush.bf16.msra.mxu0 0
    %246 = vmatpush.bf16.msra.mxu0 0
    %247 = vmatpush.bf16.msra.mxu0 %v196
    %248 = vmatpush.bf16.msra.mxu0 %v150
    %249 = vmatpush.bf16.msra.mxu0 %v141
    %250 = vmatmul.bf16.gmra.mxu0 %v186
    %v251 = vpop.f32.mrf.mxu0
    %v252 = vadd.f32 %v67, %v251
    %v253 = vpop.f32.mrf.mxu0
    %254 = vdwg.mxu0
    %255 = vmatpush.bf16.msra.mxu0 0
    %256 = vmatpush.bf16.msra.mxu0 0
    %257 = vmatpush.bf16.msra.mxu0 0
    %258 = vmatpush.bf16.msra.mxu0 0
    %259 = vmatpush.bf16.msra.mxu0 0
    %260 = vmatpush.bf16.msra.mxu0 %v199
    %261 = vmatpush.bf16.msra.mxu0 %v151
    %262 = vmatpush.bf16.msra.mxu0 %v142
    %263 = vmatmul.bf16.gmra.mxu0 %v186
    %v264 = vpop.f32.mrf.mxu0
    %v265 = vadd.f32 %v67, %v264
    %v266 = vpop.f32.mrf.mxu0
    %267 = vdwg.mxu0
    %268 = vmatpush.bf16.msra.mxu0 0
    %269 = vmatpush.bf16.msra.mxu0 0
    %270 = vmatpush.bf16.msra.mxu0 0
    %271 = vmatpush.bf16.msra.mxu0 0
    %272 = vmatpush.bf16.msra.mxu0 0
    %273 = vmatpush.bf16.msra.mxu0 %v202
    %274 = vmatpush.bf16.msra.mxu0 %v152
    %275 = vmatpush.bf16.msra.mxu0 %v143
    %276 = vmatmul.bf16.gmra.mxu0 %v186
    %v277 = vpop.f32.mrf.mxu0
    %v278 = vadd.f32 %v67, %v277
    %v279 = vpop.f32.mrf.mxu0
    %280 = vdwg.mxu0
    %281 = vmatpush.bf16.msra.mxu0 0
    %282 = vmatpush.bf16.msra.mxu0 0
    %283 = vmatpush.bf16.msra.mxu0 0
    %284 = vmatpush.bf16.msra.mxu0 0
    %285 = vmatpush.bf16.msra.mxu0 0
    %286 = vmatpush.bf16.msra.mxu0 %v205
    %287 = vmatpush.bf16.msra.mxu0 %v153
    %288 = vmatpush.bf16.msra.mxu0 %v144
    %289 = vmatmul.bf16.gmra.mxu0 %v186
    %v290 = vpop.f32.mrf.mxu0
    %v291 = vadd.f32 %v67, %v290
    %v292 = vpop.f32.mrf.mxu0
    %293 = vdwg.mxu0
    %294 = vmatpush.bf16.msra.mxu0 0
    %295 = vmatpush.bf16.msra.mxu0 0
    %296 = vmatpush.bf16.msra.mxu0 0
    %297 = vmatpush.bf16.msra.mxu0 0
    %298 = vmatpush.bf16.msra.mxu0 0
    %299 = vmatpush.bf16.msra.mxu0 %v208
    %300 = vmatpush.bf16.msra.mxu0 %v154
    %301 = vmatpush.bf16.msra.mxu0 %v145
    %302 = vmatmul.bf16.gmra.mxu0 %v186
    %v303 = vpop.f32.mrf.mxu0
    %v304 = vadd.f32 %v67, %v303
    %v305 = vpop.f32.mrf.mxu0
    %306 = vdwg.mxu0
    %307 = vmatpush.bf16.msra.mxu0 0
    %308 = vmatpush.bf16.msra.mxu0 0
    %309 = vmatpush.bf16.msra.mxu0 0
    %310 = vmatpush.bf16.msra.mxu0 0
    %311 = vmatpush.bf16.msra.mxu0 0
    %312 = vmatpush.bf16.msra.mxu0 %v211
    %313 = vmatpush.bf16.msra.mxu0 %v155
    %314 = vmatpush.bf16.msra.mxu0 %v146
    %315 = vmatmul.bf16.gmra.mxu0 %v186
    %v316 = vpop.f32.mrf.mxu0
    %v317 = vadd.f32 %v67, %v316
    %v318 = vpop.f32.mrf.mxu0
    %319 = vdwg.mxu0
    %320 = vmatpush.bf16.msra.mxu0 0
    %321 = vmatpush.bf16.msra.mxu0 0
    %322 = vmatpush.bf16.msra.mxu0 0
    %323 = vmatpush.bf16.msra.mxu0 0
    %324 = vmatpush.bf16.msra.mxu0 0
    %325 = vmatpush.bf16.msra.mxu0 %v214
    %326 = vmatpush.bf16.msra.mxu0 %v156
    %327 = vmatpush.bf16.msra.mxu0 %v147
    %328 = vmatmul.bf16.gmra.mxu0 %v186
    %v329 = vpop.f32.mrf.mxu0
    %v330 = vadd.f32 %v67, %v329
    %v331 = vpop.f32.mrf.mxu0
    %332 = vdwg.mxu0
    %v333 = vmax.f32 %v226, 0.0
    %v334 = vmax.f32 %v239, 0.0
    %v335 = vmax.f32 %v252, 0.0
    %v336 = vmax.f32 %v265, 0.0
    %v337 = vmax.f32 %v278, 0.0
    %v338 = vmax.f32 %v291, 0.0
    %v339 = vmax.f32 %v304, 0.0
    %v340 = vmax.f32 %v317, 0.0
    %v341 = vmax.f32 %v330, 0.0
    %v342 = vpack.c.bf16 %v337, %v337
    %v343 = vpack.c.bf16 %v333, %v333
    %v344 = vpack.c.bf16 %v334, %v334
    %v345 = vpack.c.bf16 %v335, %v335
    %v346 = vpack.c.bf16 %v336, %v336
    %v347 = vpack.c.bf16 %v338, %v338
    %v348 = vpack.c.bf16 %v339, %v339
    %v349 = vpack.c.bf16 %v340, %v340
    %v350 = vpack.c.bf16 %v341, %v341
    %351 = vset.pattern.permute.xlu0 1
    %352 = vperm.xlu0 %351, %v37
    %v353 = vpop.permute.xlu0 %352
    %356 = vset.pattern.permute.xlu0 1
    %357 = vperm.xlu0 %356, %v38
    %v358 = vpop.permute.xlu0 %357
    %vm360 = vcmask 64512
    %v362 = vsel %vm360, %v34, 0
    %v365 = vsel %vm188, %v343, 0
    %v368 = vsel %vm188, %v344, 0
    %v371 = vsel %vm188, %v345, 0
    %v374 = vsel %vm188, %v346, 0
    %v377 = vsel %vm188, %v342, 0
    %v380 = vsel %vm188, %v347, 0
    %v383 = vsel %vm188, %v348, 0
    %v386 = vsel %vm188, %v349, 0
    %v389 = vsel %vm188, %v350, 0
    %391 = vmatpush.bf16.msra.mxu0 0
    %392 = vmatpush.bf16.msra.mxu0 0
    %393 = vmatpush.bf16.msra.mxu0 0
    %394 = vmatpush.bf16.msra.mxu0 0
    %395 = vmatpush.bf16.msra.mxu0 0
    %396 = vmatpush.bf16.msra.mxu0 0
    %397 = vmatpush.bf16.msra.mxu0 0
    %398 = vmatpush.bf16.msra.mxu0 %v365
    %399 = vmatmul.bf16.gmra.mxu0 %v362
    %v400 = vpop.f32.mrf.mxu0
    %v401 = vadd.f32 %v353, %v400
    %v402 = vpop.f32.mrf.mxu0
    %v403 = vadd.f32 %v358, %v402
    %404 = vdwg.mxu0
    %405 = vmatpush.bf16.msra.mxu0 0
    %406 = vmatpush.bf16.msra.mxu0 0
    %407 = vmatpush.bf16.msra.mxu0 0
    %408 = vmatpush.bf16.msra.mxu0 0
    %409 = vmatpush.bf16.msra.mxu0 0
    %410 = vmatpush.bf16.msra.mxu0 0
    %411 = vmatpush.bf16.msra.mxu0 0
    %412 = vmatpush.bf16.msra.mxu0 %v368
    %413 = vmatmul.bf16.gmra.mxu0 %v362
    %v414 = vpop.f32.mrf.mxu0
    %v415 = vadd.f32 %v353, %v414
    %v416 = vpop.f32.mrf.mxu0
    %v417 = vadd.f32 %v358, %v416
    %418 = vdwg.mxu0
    %419 = vmatpush.bf16.msra.mxu0 0
    %420 = vmatpush.bf16.msra.mxu0 0
    %421 = vmatpush.bf16.msra.mxu0 0
    %422 = vmatpush.bf16.msra.mxu0 0
    %423 = vmatpush.bf16.msra.mxu0 0
    %424 = vmatpush.bf16.msra.mxu0 0
    %425 = vmatpush.bf16.msra.mxu0 0
    %426 = vmatpush.bf16.msra.mxu0 %v371
    %427 = vmatmul.bf16.gmra.mxu0 %v362
    %v428 = vpop.f32.mrf.mxu0
    %v429 = vadd.f32 %v353, %v428
    %v430 = vpop.f32.mrf.mxu0
    %v431 = vadd.f32 %v358, %v430
    %432 = vdwg.mxu0
    %433 = vmatpush.bf16.msra.mxu0 0
    %434 = vmatpush.bf16.msra.mxu0 0
    %435 = vmatpush.bf16.msra.mxu0 0
    %436 = vmatpush.bf16.msra.mxu0 0
    %437 = vmatpush.bf16.msra.mxu0 0
    %438 = vmatpush.bf16.msra.mxu0 0
    %439 = vmatpush.bf16.msra.mxu0 0
    %440 = vmatpush.bf16.msra.mxu0 %v374
    %441 = vmatmul.bf16.gmra.mxu0 %v362
    %v442 = vpop.f32.mrf.mxu0
    %v443 = vadd.f32 %v353, %v442
    %v444 = vpop.f32.mrf.mxu0
    %v445 = vadd.f32 %v358, %v444
    %446 = vdwg.mxu0
    %447 = vmatpush.bf16.msra.mxu0 0
    %448 = vmatpush.bf16.msra.mxu0 0
    %449 = vmatpush.bf16.msra.mxu0 0
    %450 = vmatpush.bf16.msra.mxu0 0
    %451 = vmatpush.bf16.msra.mxu0 0
    %452 = vmatpush.bf16.msra.mxu0 0
    %453 = vmatpush.bf16.msra.mxu0 0
    %454 = vmatpush.bf16.msra.mxu0 %v377
    %455 = vmatmul.bf16.gmra.mxu0 %v362
    %v456 = vpop.f32.mrf.mxu0
    %v457 = vadd.f32 %v353, %v456
    %v458 = vpop.f32.mrf.mxu0
    %v459 = vadd.f32 %v358, %v458
    %460 = vdwg.mxu0
    %461 = vmatpush.bf16.msra.mxu0 0
    %462 = vmatpush.bf16.msra.mxu0 0
    %463 = vmatpush.bf16.msra.mxu0 0
    %464 = vmatpush.bf16.msra.mxu0 0
    %465 = vmatpush.bf16.msra.mxu0 0
    %466 = vmatpush.bf16.msra.mxu0 0
    %467 = vmatpush.bf16.msra.mxu0 0
    %468 = vmatpush.bf16.msra.mxu0 %v380
    %469 = vmatmul.bf16.gmra.mxu0 %v362
    %v470 = vpop.f32.mrf.mxu0
    %v471 = vadd.f32 %v353, %v470
    %v472 = vpop.f32.mrf.mxu0
    %v473 = vadd.f32 %v358, %v472
    %474 = vdwg.mxu0
    %475 = vmatpush.bf16.msra.mxu0 0
    %476 = vmatpush.bf16.msra.mxu0 0
    %477 = vmatpush.bf16.msra.mxu0 0
    %478 = vmatpush.bf16.msra.mxu0 0
    %479 = vmatpush.bf16.msra.mxu0 0
    %480 = vmatpush.bf16.msra.mxu0 0
    %481 = vmatpush.bf16.msra.mxu0 0
    %482 = vmatpush.bf16.msra.mxu0 %v383
    %483 = vmatmul.bf16.gmra.mxu0 %v362
    %v484 = vpop.f32.mrf.mxu0
    %v485 = vadd.f32 %v353, %v484
    %v486 = vpop.f32.mrf.mxu0
    %v487 = vadd.f32 %v358, %v486
    %488 = vdwg.mxu0
    %489 = vmatpush.bf16.msra.mxu0 0
    %490 = vmatpush.bf16.msra.mxu0 0
    %491 = vmatpush.bf16.msra.mxu0 0
    %492 = vmatpush.bf16.msra.mxu0 0
    %493 = vmatpush.bf16.msra.mxu0 0
    %494 = vmatpush.bf16.msra.mxu0 0
    %495 = vmatpush.bf16.msra.mxu0 0
    %496 = vmatpush.bf16.msra.mxu0 %v386
    %497 = vmatmul.bf16.gmra.mxu0 %v362
    %v498 = vpop.f32.mrf.mxu0
    %v499 = vadd.f32 %v353, %v498
    %v500 = vpop.f32.mrf.mxu0
    %v501 = vadd.f32 %v358, %v500
    %502 = vdwg.mxu0
    %503 = vmatpush.bf16.msra.mxu0 0
    %504 = vmatpush.bf16.msra.mxu0 0
    %505 = vmatpush.bf16.msra.mxu0 0
    %506 = vmatpush.bf16.msra.mxu0 0
    %507 = vmatpush.bf16.msra.mxu0 0
    %508 = vmatpush.bf16.msra.mxu0 0
    %509 = vmatpush.bf16.msra.mxu0 0
    %510 = vmatpush.bf16.msra.mxu0 %v389
    %511 = vmatmul.bf16.gmra.mxu0 %v362
    %v512 = vpop.f32.mrf.mxu0
    %v513 = vadd.f32 %v353, %v512
    %v514 = vpop.f32.mrf.mxu0
    %v515 = vadd.f32 %v358, %v514
    %516 = vdwg.mxu0
    %v517 = vmax.f32 %v401, 0.0
    %v518 = vmax.f32 %v415, 0.0
    %v519 = vmax.f32 %v429, 0.0
    %v520 = vmax.f32 %v443, 0.0
    %v521 = vmax.f32 %v457, 0.0
    %v522 = vmax.f32 %v471, 0.0
    %v523 = vmax.f32 %v485, 0.0
    %v524 = vmax.f32 %v499, 0.0
    %v525 = vmax.f32 %v513, 0.0
    %v526 = vmax.f32 %v403, 0.0
    %v527 = vmax.f32 %v417, 0.0
    %v528 = vmax.f32 %v431, 0.0
    %v529 = vmax.f32 %v445, 0.0
    %v530 = vmax.f32 %v459, 0.0
    %v531 = vmax.f32 %v473, 0.0
    %v532 = vmax.f32 %v487, 0.0
    %v533 = vmax.f32 %v501, 0.0
    %v534 = vmax.f32 %v515, 0.0
    %v535 = vld [vmem:[%s3] sm:$0xff]
    %v536 = vld [vmem:[%s3 + $0x8] sm:$0xff]
    %v537 = vld [vmem:[%s3 + $0x10] sm:$0xff]
    %v538 = vld [vmem:[%s3 + $0x18] sm:$0xff]
    %v539 = vld [vmem:[%s3 + $0x20] sm:$0xff]
    %v540 = vld [vmem:[%s3 + $0x28] sm:$0xff]
    %v541 = vld [vmem:[%s3 + $0x30] sm:$0xff]
    %v542 = vld [vmem:[%s3 + $0x38] sm:$0xff]
    %v543 = vld [vmem:[%s3 + $0x40] sm:$0xff]
    %v544 = vld [vmem:[%s3 + $0x48] sm:$0xff]
    %v545 = vld [vmem:[%s3 + $0x50] sm:$0xff]
    %v546 = vld [vmem:[%s3 + $0x58] sm:$0xff]
    %v547 = vld [vmem:[%s3 + $0x60] sm:$0xff]
    %v548 = vld [vmem:[%s3 + $0x68] sm:$0xff]
    %v549 = vld [vmem:[%s3 + $0x70] sm:$0xff]
    %v550 = vld [vmem:[%s3 + $0x78] sm:$0xff]
    %v551 = vld [vmem:[%s3 + $0x80] sm:$0xff]
    %v552 = vld [vmem:[%s3 + $0x88] sm:$0xff]
    %v553 = vmul.f32 %v517, %v535
    %v554 = vmul.f32 %v518, %v536
    %v555 = vmul.f32 %v519, %v537
    %v556 = vmul.f32 %v520, %v538
    %v557 = vmul.f32 %v521, %v539
    %v558 = vmul.f32 %v522, %v540
    %v559 = vmul.f32 %v523, %v541
    %v560 = vmul.f32 %v524, %v542
    %v561 = vmul.f32 %v525, %v543
    %v562 = vmul.f32 %v526, %v544
    %v563 = vmul.f32 %v527, %v545
    %v564 = vmul.f32 %v528, %v546
    %v565 = vmul.f32 %v529, %v547
    %v566 = vmul.f32 %v530, %v548
    %v567 = vmul.f32 %v531, %v549
    %v568 = vmul.f32 %v532, %v550
    %v569 = vmul.f32 %v533, %v551
    %v570 = vmul.f32 %v534, %v552
    %v571 = vadd.f32 %v553, %v554
    %v572 = vadd.f32 %v562, %v563
    %v573 = vadd.f32 %v571, %v555
    %v574 = vadd.f32 %v572, %v564
    %v575 = vadd.f32 %v573, %v556
    %v576 = vadd.f32 %v574, %v565
    %v577 = vadd.f32 %v575, %v557
    %v578 = vadd.f32 %v576, %v566
    %v579 = vadd.f32 %v577, %v558
    %v580 = vadd.f32 %v578, %v567
    %v581 = vadd.f32 %v579, %v559
    %v582 = vadd.f32 %v580, %v568
    %v583 = vadd.f32 %v581, %v560
    %v584 = vadd.f32 %v582, %v569
    %v585 = vadd.f32 %v583, %v561
    %v586 = vadd.f32 %v584, %v570
    %587 = vset.pattern.permute.xlu0 2
    %588 = vperm.xlu0 %587, %v37
    %v589 = vpop.permute.xlu0 %588
    %591 = vset.pattern.permute.xlu0 2
    %592 = vperm.xlu0 %591, %v38
    %v593 = vpop.permute.xlu0 %592
    %v595 = vadd.f32 %v585, %v589
    %v596 = vadd.f32 %v586, %v593
    %v597 = vmax.f32 %v595, 0.0
    %v598 = vmax.f32 %v596, 0.0
    %v599 = vpack.c.bf16 %v598, %v597
    %600 = vset.pattern.permute.xlu0 3
    %601 = vperm.xlu0 %600, %v37
    %v602 = vpop.permute.xlu0 %601
    %vm604 = vcmask 130048
    %v606 = vsel %vm604, %v35, 0
    %608 = vmatpush.bf16.msra.mxu0 0
    %609 = vmatpush.bf16.msra.mxu0 0
    %610 = vmatpush.bf16.msra.mxu0 0
    %611 = vmatpush.bf16.msra.mxu0 0
    %612 = vmatpush.bf16.msra.mxu0 0
    %613 = vmatpush.bf16.msra.mxu0 0
    %614 = vmatpush.bf16.msra.mxu0 0
    %615 = vmatpush.bf16.msra.mxu0 %v599
    %616 = vmatmul.bf16.gmra.mxu0 %v606
    %v617 = vpop.f32.mrf.mxu0
    %v618 = vadd.f32 %v602, %v617
    %v619 = vpop.f32.mrf.mxu0
    %620 = vdwg.mxu0
    %v621 = vmax.f32 %v618, 0.0
    %622 = vset.pattern.permute.xlu0 4
    %623 = vperm.xlu0 %622, %v37
    %v624 = vpop.permute.xlu0 %623
    %v627 = vsel %vm360, %v36, 0
    %629 = vmatpush.bf16.msra.mxu0 0
    %630 = vmatpush.bf16.msra.mxu0 0
    %631 = vmatpush.bf16.msra.mxu0 0
    %632 = vmatpush.bf16.msra.mxu0 0
    %633 = vmatpush.bf16.msra.mxu0 0
    %634 = vmatpush.bf16.msra.mxu0 0
    %635 = vmatpush.bf16.msra.mxu0 0
    %636 = vmatpush.bf16.msra.mxu0 %v377
    %637 = vmatmul.bf16.gmra.mxu0 %v627
    %v638 = vpop.f32.mrf.mxu0
    %v639 = vadd.f32 %v624, %v638
    %v640 = vpop.f32.mrf.mxu0
    %641 = vdwg.mxu0
    %v642 = vmax.f32 %v639, 0.0
    %v643 = vadd.f32 %v621, %v642
    %v644 = vld [vmem:[%s4] sm:$0xff]
    %v645 = vld [vmem:[%s4 + $0x8] sm:$0x3]
    %v646 = vperm.slane %v643, 0
    %v647 = vmul.f32 %v646, %v644
    %v648 = vmul.f32 %v646, %v645
    %s649 = scalar_lea.vmem %s4, 16
    %v650 = vld [vmem:[%s649] sm:$0xff]
    %v651 = vld [vmem:[%s649 + $0x8] sm:$0x3]
    %v652 = vperm.slane %v643, 1
    %v653 = vmul.f32 %v652, %v650
    %v654 = vmul.f32 %v652, %v651
    %v655 = vadd.f32 %v647, %v653
    %v656 = vadd.f32 %v648, %v654
    %s657 = scalar_lea.vmem %s4, 32
    %v658 = vld [vmem:[%s657] sm:$0xff]
    %v659 = vld [vmem:[%s657 + $0x8] sm:$0x3]
    %v660 = vperm.slane %v643, 2
    %v661 = vmul.f32 %v660, %v658
    %v662 = vmul.f32 %v660, %v659
    %v663 = vadd.f32 %v655, %v661
    %v664 = vadd.f32 %v656, %v662
    %s665 = scalar_lea.vmem %s4, 48
    %v666 = vld [vmem:[%s665] sm:$0xff]
    %v667 = vld [vmem:[%s665 + $0x8] sm:$0x3]
    %v668 = vperm.slane %v643, 3
    %v669 = vmul.f32 %v668, %v666
    %v670 = vmul.f32 %v668, %v667
    %v671 = vadd.f32 %v663, %v669
    %v672 = vadd.f32 %v664, %v670
    %s673 = scalar_lea.vmem %s4, 64
    %v674 = vld [vmem:[%s673] sm:$0xff]
    %v675 = vld [vmem:[%s673 + $0x8] sm:$0x3]
    %v676 = vperm.slane %v643, 4
    %v677 = vmul.f32 %v676, %v674
    %v678 = vmul.f32 %v676, %v675
    %v679 = vadd.f32 %v671, %v677
    %v680 = vadd.f32 %v672, %v678
    %s681 = scalar_lea.vmem %s4, 80
    %v682 = vld [vmem:[%s681] sm:$0xff]
    %v683 = vld [vmem:[%s681 + $0x8] sm:$0x3]
    %v684 = vperm.slane %v643, 5
    %v685 = vmul.f32 %v684, %v682
    %v686 = vmul.f32 %v684, %v683
    %v687 = vadd.f32 %v679, %v685
    %v688 = vadd.f32 %v680, %v686
    %s689 = scalar_lea.vmem %s4, 96
    %v690 = vld [vmem:[%s689] sm:$0xff]
    %v691 = vld [vmem:[%s689 + $0x8] sm:$0x3]
    %v692 = vperm.slane %v643, 6
    %v693 = vmul.f32 %v692, %v690
    %v694 = vmul.f32 %v692, %v691
    %v695 = vadd.f32 %v687, %v693
    %v696 = vadd.f32 %v688, %v694
    %s697 = scalar_lea.vmem %s4, 112
    %v698 = vld [vmem:[%s697] sm:$0xff]
    %v699 = vld [vmem:[%s697 + $0x8] sm:$0x3]
    %v700 = vperm.slane %v643, 7
    %v701 = vmul.f32 %v700, %v698
    %v702 = vmul.f32 %v700, %v699
    %v703 = vadd.f32 %v695, %v701
    %v704 = vadd.f32 %v696, %v702
    %v705 = vld [vmem:[%s5] sm:$0x3]
    %v706 = vld [vmem:[%s6] sm:$0x1]
    %v708 = vperm.slane %v706, 0
    %710 = vmatpush.xpose.msra.mxu0 0.0
    %711 = vmatpush.xpose.msra.mxu0 0.0
    %712 = vmatpush.xpose.msra.mxu0 0.0
    %713 = vmatpush.xpose.msra.mxu0 0.0
    %714 = vmatpush.xpose.msra.mxu0 0.0
    %715 = vmatpush.xpose.msra.mxu0 0.0
    %716 = vmatpush.xpose.msra.mxu0 0.0
    %717 = vmatpush.xpose.msra.mxu0 0.0
    %718 = vmatpush.xpose.msra.mxu0 0.0
    %719 = vmatpush.xpose.msra.mxu0 0.0
    %720 = vmatpush.xpose.msra.mxu0 0.0
    %721 = vmatpush.xpose.msra.mxu0 0.0
    %722 = vmatpush.xpose.msra.mxu0 0.0
    %723 = vmatpush.xpose.msra.mxu0 0.0
    %724 = vmatpush.xpose.msra.mxu0 %v704
    %725 = vmatpush.xpose.msra.mxu0 %v703
    %726 = vmatmul.f32.gmra.mxu0 %v705
    %v727 = vpop.f32.mrf.mxu0
    %v728 = vadd.f32 %v708, %v727
    %729 = vdwg.mxu0
    %vm730 = vcmask 74752
    %731 = vst.msk [vmem:[#allocation2] sm:$0x3] %vm730, %v728
    // Predicated region
    $region30: #{searchspace_forward.1} parent=1 // pred_check
      _
    $region31: #{searchspace_forward.1} parent=1 // pred_check_branch
      %733 = sbr.rel (0) target = $region33
    $region32: #{searchspace_forward.1} parent=1 // pred_region
      %735 = vsyncadd [#allocation3], 0
      %s737 = sshll.u32 [#allocation2], 4
      %s738 = int_to_ptr.vmem [resolvable:$true] %s737
      %s739 = sshll.u32 %s7, 4
      %s740 = int_to_ptr.hbm [resolvable:$true] %s739
      %742 = dma.vmem_to_hbm [thread:$0]  %s738, 32, %s740, [#allocation3]
    $region33: #{searchspace_forward.1} parent=1 // pred_fallthru
      _
    // Predicated region
    $region34: #{searchspace_forward.1} parent=1 // pred_check
      _
    $region35: #{searchspace_forward.1} parent=1 // pred_check_branch
      %744 = sbr.rel (0) target = $region37
    $region36: #{searchspace_forward.1} parent=1 // pred_region
      %746 = dma.done [#allocation3], 32
    $region37: #{searchspace_forward.1} parent=1 // pred_fallthru
      _
    %747 = vsyncpa [#allocation3], 1

</llo_original>
